<compile_context>
chip_gen: v5e
topology: v5e:2x2
jax: 0.10.0
libtpu: 0.0.40
codegen_flags: <defaults>
</compile_context>

<pallas_src>
import numpy as np
import jax
import jax.numpy as jnp
from jax.experimental import pallas as pl
from jax.experimental.pallas import tpu as pltpu


# ----------------------------------------------------------------------------
# Deterministic "parameters" (same constants the torch module builds in __init__)
# ----------------------------------------------------------------------------
_Y_TABLE = np.array(
    [[16, 11, 10, 16, 24, 40, 51, 61],
     [12, 12, 14, 19, 26, 58, 60, 55],
     [14, 13, 16, 24, 40, 57, 69, 56],
     [14, 17, 22, 29, 51, 87, 80, 62],
     [18, 22, 37, 56, 68, 109, 103, 77],
     [24, 35, 55, 64, 81, 104, 113, 92],
     [49, 64, 78, 87, 103, 121, 120, 101],
     [72, 92, 95, 98, 112, 100, 103, 99]], dtype=np.float32).T

_C_TABLE = np.full((8, 8), 99.0, dtype=np.float32)
_C_TABLE[:4, :4] = np.array(
    [[17, 18, 24, 47],
     [18, 21, 26, 66],
     [24, 26, 56, 99],
     [47, 66, 99, 99]], dtype=np.float32).T


def _dct_1d_matrix():
    alpha = np.array([1.0 / np.sqrt(2.0)] + [1.0] * 7, dtype=np.float64)
    T = np.zeros((8, 8), dtype=np.float64)
    for u in range(8):
        for x in range(8):
            T[u, x] = 0.5 * alpha[u] * np.cos((2 * x + 1) * u * np.pi / 16.0)
    return T


_T1D = _dct_1d_matrix()
# Flattened 2-D DCT as 64x64 matmuls:  coef_flat = (x_flat - 128) @ _DCT_MAT
#                                      recon_flat = coef_flat @ _IDCT_MAT + 128
_DCT_MAT = np.kron(_T1D, _T1D).T          # (64, 64) float64
_IDCT_MAT = np.kron(_T1D, _T1D)           # (64, 64) float64

_VMEM_LIMIT = 32 * 1024 * 1024            # <= physical VMEM on v5e/v6e/v7x


def quality_to_factor(quality):
    if quality < 50:
        q = 5000.0 / quality
    else:
        q = 200.0 - quality * 2.0
    return q / 100.0


def _default_pack():
    """Blocks packed per lane row: 2 (128 lanes) on 128x128-MXU chips, 4 on v6e/v7x."""
    try:
        kind = jax.devices()[0].device_kind.lower()
    except Exception:
        kind = ""
    if ("v6" in kind) or ("v7" in kind) or ("7x" in kind):
        return 4
    return 2


def _folded_matrices(qtable, factor, pack):
    """Quantization folded into the (packed, block-diagonal) DCT / IDCT matrices."""
    qf = (qtable.astype(np.float64) * float(factor)).reshape(-1)        # (64,)
    dct_q = _DCT_MAT / qf[None, :]                                      # divide-by-q folded
    idct_q = qf[:, None] * _IDCT_MAT                                    # multiply-by-q folded
    eye = np.eye(pack)
    dct_p = np.kron(eye, dct_q).astype(np.float32)                      # (64p, 64p)
    idct_p = np.kron(eye, idct_q).astype(np.float32)                    # (64p, 64p)
    return dct_p, idct_p


def _pool_matrix(w):
    """(w, w//2) column 2x average-pool matrix."""
    p = np.zeros((w, w // 2), dtype=np.float32)
    cols = np.arange(w // 2)
    p[2 * cols, cols] = 0.5
    p[2 * cols + 1, cols] = 0.5
    return p


def _upsample_matrix(w):
    """(w//2, w) column nearest-neighbour 2x repeat matrix."""
    u = np.zeros((w // 2, w), dtype=np.float32)
    cols = np.arange(w // 2)
    u[cols, 2 * cols] = 1.0
    u[cols, 2 * cols + 1] = 1.0
    return u


# ----------------------------------------------------------------------------
# Pallas kernels
# ----------------------------------------------------------------------------
def _make_compress_kernel(w):
    """RGB -> YCbCr with fused chroma 2x2 average pool.

    x_ref block: (1, 3, rt2, 2W) float32 in [0,1]; each row holds an (even|odd) row pair
    of the original image packed along lanes.  Outputs: full-res luma in the same row-pair
    layout, and half-res cb/cr.
    """
    W = w

    def kernel(x_ref, pool_ref, y_ref, c_ref):
        r2 = x_ref[0, 0] * 255.0
        g2 = x_ref[0, 1] * 255.0
        b2 = x_ref[0, 2] * 255.0
        # Luma at full resolution (pure elementwise, layout preserved).
        y_ref[0] = 0.299 * r2 + 0.587 * g2 + 0.114 * b2
        # Vertical 2x pool = average of the even / odd lane halves.
        rv = 0.5 * (r2[:, :W] + r2[:, W:])
        gv = 0.5 * (g2[:, :W] + g2[:, W:])
        bv = 0.5 * (b2[:, :W] + b2[:, W:])
        cbv = -0.168736 * rv - 0.331264 * gv + 0.5 * bv + 128.0
        crv = 0.5 * rv - 0.418688 * gv - 0.081312 * bv + 128.0
        # Horizontal 2x pool on the MXU with the constant (W, W/2) averaging matrix.
        c_ref[0, 0] = jnp.dot(cbv, pool_ref[...], preferred_element_type=jnp.float32)
        c_ref[0, 1] = jnp.dot(crv, pool_ref[...], preferred_element_type=jnp.float32)

    return kernel


def _make_decompress_kernel(w):
    """YCbCr -> RGB with fused chroma nearest x2 upsample, clamp to [0,255], /255.

    y_ref block: (1, rt2, 2W) row-pair packed luma; c_ref block: (1, 2, rt2, W/2)
    half-res cb/cr; output block: (1, 3, rt2, 2W) row-pair packed RGB.
    """
    W = w

    def kernel(y_ref, c_ref, up_ref, o_ref):
        # Horizontal nearest x2 upsample on the MXU (0/1 matrix -> exact).
        cb = jnp.dot(c_ref[0, 0] - 128.0, up_ref[...], preferred_element_type=jnp.float32)
        cr = jnp.dot(c_ref[0, 1] - 128.0, up_ref[...], preferred_element_type=jnp.float32)
        y2 = y_ref[0]
        inv255 = 1.0 / 255.0

        def mix(yp):
            r = yp + 1.402 * cr
            g = yp - 0.344136 * cb - 0.714136 * cr
            b = yp + 1.772 * cb
            return r, g, b

        # Vertical nearest x2 upsample is free: even and odd output rows reuse the same
        # chroma rows; they are written to the two lane halves of the row-pair layout.
        re_, ge_, be_ = mix(y2[:, :W])
        ro_, go_, bo_ = mix(y2[:, W:])

        def clamp(v):
            return jnp.minimum(255.0, jnp.maximum(0.0, v)) * inv255

        o_ref[0, 0] = clamp(jnp.concatenate([re_, ro_], axis=-1))
        o_ref[0, 1] = clamp(jnp.concatenate([ge_, go_], axis=-1))
        o_ref[0, 2] = clamp(jnp.concatenate([be_, bo_], axis=-1))

    return kernel


def _jpeg_core_kernel(blocks_ref, dct_ref, idct_ref, out_ref):
    # blocks_ref: (tm, 64*pack) -- `pack` flattened 8x8 spatial blocks per lane row.
    # dct_ref / idct_ref: block-diagonal matrices with the quantization table
    # (and quality factor) pre-folded in.
    x = blocks_ref[...] - 128.0
    q = jnp.dot(x, dct_ref[...], preferred_element_type=jnp.float32)     # DCT / qtab
    # TODO(synk): the 'fft_quantize' rounding variant is not in the provided source; use
    # the standard DiffJPEG differentiable rounding round(x) + (x - round(x))^3.
    r = jnp.round(q)
    qr = r + (q - r) ** 3
    rec = jnp.dot(qr, idct_ref[...], preferred_element_type=jnp.float32)  # qtab * IDCT
    out_ref[...] = rec + 128.0


# ----------------------------------------------------------------------------
# Wrappers around pallas_call
# ----------------------------------------------------------------------------
def _pick_row_tile(h2, w, target_bytes=1 << 20):
    """Largest multiple-of-8 divisor of h2 with a ~1 MiB luma tile (rt2 * 2W * 4 bytes)."""
    cap = max(8, (target_bytes // (8 * w)) // 8 * 8)
    if h2 <= cap:
        return h2
    for rt in range(cap, 7, -8):
        if h2 % rt == 0:
            return rt
    return 8  # h2 is always a multiple of 8 (H % 16 == 0)


def _pick_block_tile(rows, tm_max=4096):
    """Row tile for jpeg_core that avoids padding whenever possible."""
    if rows <= tm_max:
        return rows, rows                                  # single full block, no pad
    start = (tm_max // 8) * 8
    for d in range(start, 7, -8):
        if rows % d == 0:
            return d, rows                                 # exact divisor, no pad
    rows_p = ((rows + start - 1) // start) * start         # rare fallback: pad
    return start, rows_p


def compress_color(x):
    """x: (N, 3, H, W) in [0,1] -> (y (N,H,W) full-res, chroma (N,2,H/2,W/2) half-res)."""
    n, _, h, w = x.shape
    h2, w2 = h // 2, w // 2
    x2 = x.reshape(n, 3, h2, 2 * w)                        # zero-copy row-pair packing
    rt2 = _pick_row_tile(h2, w)
    pool = jnp.asarray(_pool_matrix(w))

    y, chroma = pl.pallas_call(
        _make_compress_kernel(w),
        out_shape=[jax.ShapeDtypeStruct((n, h2, 2 * w), jnp.float32),
                   jax.ShapeDtypeStruct((n, 2, h2, w2), jnp.float32)],
        grid_spec=pltpu.PrefetchScalarGridSpec(
            num_scalar_prefetch=0,
            grid=(n, h2 // rt2),
            in_specs=[pl.BlockSpec((1, 3, rt2, 2 * w), lambda i, j: (i, 0, j, 0)),
                      pl.BlockSpec((w, w2), lambda i, j: (0, 0))],
            out_specs=[pl.BlockSpec((1, rt2, 2 * w), lambda i, j: (i, j, 0)),
                       pl.BlockSpec((1, 2, rt2, w2), lambda i, j: (i, 0, j, 0))],
        ),
        compiler_params=pltpu.CompilerParams(
            dimension_semantics=("parallel", "parallel"),
            vmem_limit_bytes=_VMEM_LIMIT),
    )(x2, pool)
    return y.reshape(n, h, w), chroma


def decompress_color(y, chroma):
    """y (N,H,W), chroma (N,2,H/2,W/2) -> (N,3,H,W) RGB in [0,1]."""
    n, h, w = y.shape
    h2, w2 = h // 2, w // 2
    y2 = y.reshape(n, h2, 2 * w)                           # zero-copy row-pair packing
    rt2 = _pick_row_tile(h2, w)
    up = jnp.asarray(_upsample_matrix(w))

    out = pl.pallas_call(
        _make_decompress_kernel(w),
        out_shape=jax.ShapeDtypeStruct((n, 3, h2, 2 * w), jnp.float32),
        grid_spec=pltpu.PrefetchScalarGridSpec(
            num_scalar_prefetch=0,
            grid=(n, h2 // rt2),
            in_specs=[pl.BlockSpec((1, rt2, 2 * w), lambda i, j: (i, j, 0)),
                      pl.BlockSpec((1, 2, rt2, w2), lambda i, j: (i, 0, j, 0)),
                      pl.BlockSpec((w2, w), lambda i, j: (0, 0))],
            out_specs=pl.BlockSpec((1, 3, rt2, 2 * w), lambda i, j: (i, 0, j, 0)),
        ),
        compiler_params=pltpu.CompilerParams(
            dimension_semantics=("parallel", "parallel"),
            vmem_limit_bytes=_VMEM_LIMIT),
    )(y2, chroma, up)
    return out.reshape(n, 3, h, w)


def jpeg_core(blocks, qtable, factor, pack, tm_max=4096):
    """DCT -> quantize (diff round) -> dequantize -> IDCT on (NB, 64) blocks.

    Blocks are packed `pack`-per-row into lane-dense (NB/pack, 64*pack) rows and processed
    with block-diagonal DCT/IDCT matrices (quantization pre-folded).
    """
    nb = blocks.shape[0]
    if nb % pack != 0:          # nb is always even; fall back to 2-wide packing
        pack = 2
    rows = nb // pack
    lanes = 64 * pack
    packed = blocks.reshape(rows, lanes)                   # zero-copy

    tm_eff, rows_p = _pick_block_tile(rows, tm_max)
    padded = rows_p != rows
    if padded:
        packed = jnp.pad(packed, ((0, rows_p - rows), (0, 0)))   # rare fallback only

    dct_np, idct_np = _folded_matrices(qtable, factor, pack)

    out = pl.pallas_call(
        _jpeg_core_kernel,
        out_shape=jax.ShapeDtypeStruct((rows_p, lanes), jnp.float32),
        grid_spec=pltpu.PrefetchScalarGridSpec(
            num_scalar_prefetch=0,
            grid=(rows_p // tm_eff,),
            in_specs=[
                pl.BlockSpec((tm_eff, lanes), lambda i: (i, 0)),
                pl.BlockSpec((lanes, lanes), lambda i: (0, 0)),
                pl.BlockSpec((lanes, lanes), lambda i: (0, 0)),
            ],
            out_specs=pl.BlockSpec((tm_eff, lanes), lambda i: (i, 0)),
        ),
        compiler_params=pltpu.CompilerParams(
            dimension_semantics=("parallel",),
            vmem_limit_bytes=_VMEM_LIMIT),
    )(packed, jnp.asarray(dct_np), jnp.asarray(idct_np))

    if padded:
        out = out[:rows]
    return out.reshape(nb, 64)


# ----------------------------------------------------------------------------
# XLA glue: 8x8 block split / merge
# TODO(synk): the block split/merge transposes are still materialized by XLA (~20% of
# total HBM traffic); doing the relayout in-kernel needs lane<->sublane reshapes whose
# Mosaic lowering could not be validated here.
# ----------------------------------------------------------------------------
def _block_split(img):
    # (..., H, W) -> (num_blocks, 64), block interior flattened row-major (8x + y)
    *_, h, w = img.shape
    blk = img.reshape(-1, h // 8, 8, w // 8, 8).transpose(0, 1, 3, 2, 4)
    return blk.reshape(-1, 64)


def _block_merge(blocks, shape):
    # inverse of _block_split; `shape` is the target (..., H, W) shape
    *_, h, w = shape
    blk = blocks.reshape(-1, h // 8, w // 8, 8, 8).transpose(0, 1, 3, 2, 4)
    return blk.reshape(shape)


# ----------------------------------------------------------------------------
# Full DiffJPEG_new forward (mode='fix')
# ----------------------------------------------------------------------------
def diffjpeg_new_forward(x, quality):
    """x: (N, 3, H, W) float32 in [0, 1]; returns (N, 3, H, W) float32 in [0, 1]."""
    n, c, h, w = x.shape
    assert c == 3 and h % 16 == 0 and w % 16 == 0
    factor = quality_to_factor(quality)
    pack = _default_pack()

    # --- compress (color conversion + fused chroma 2x2 avg pool) ---
    y, chroma = compress_color(x)                          # (N,H,W), (N,2,H/2,W/2)

    yb = _block_split(y)
    cbcr_b = _block_split(chroma)                          # single stacked chroma plane set

    # --- JPEG core (quantize + dequantize round-trip in one kernel, per table) ---
    y_rec = jpeg_core(yb, _Y_TABLE, factor, pack)
    c_rec = jpeg_core(cbcr_b, _C_TABLE, factor, pack)

    # --- decompress (block merge + fused chroma nearest x2 upsample + color) ---
    y_m = _block_merge(y_rec, (n, h, w))
    c_m = _block_merge(c_rec, (n, 2, h // 2, w // 2))
    return decompress_color(y_m, c_m)


if __name__ == "__main__":
    key = jax.random.PRNGKey(0)
    x = jax.random.uniform(key, (2, 3, 32, 32), dtype=jnp.float32)

    # quality is drawn as np.random.randint(quality-3, quality+3+1) in the module;
    # seed numpy for determinism (quality=80, range=3 -> [77, 84)).
    np.random.seed(0)
    quality = int(np.random.randint(80 - 3, 80 + 3 + 1))

    out = jax.jit(lambda v: diffjpeg_new_forward(v, quality))(x)
    out = jax.block_until_ready(out)

    assert out.shape == (2, 3, 32, 32)
    assert bool(jnp.all(jnp.isfinite(out)))
    assert float(out.min()) >= 0.0 and float(out.max()) <= 1.0
    print("KERNEL_OK")
</pallas_src>

<mosaic_0001>
module attributes {stable_mosaic.version = 11 : i64} {
  func.func @kernel(%arg0: i32, %arg1: i32, %arg2: memref<1x3x16x64xf32, #tpu.memory_space<vmem>>, %arg3: memref<32x16xf32, #tpu.memory_space<vmem>>, %arg4: memref<1x16x64xf32, #tpu.memory_space<vmem>>, %arg5: memref<1x2x16x16xf32, #tpu.memory_space<vmem>>) attributes {dimension_semantics = [#tpu.dimension_semantics<parallel>, #tpu.dimension_semantics<parallel>], iteration_bounds = array<i64: 2, 1>, scalar_prefetch = 0 : i64, scratch_operands = 0 : i64, tpu.core_type = #tpu.core_type<tc>, window_params = [{transform_indices = @transform_0, window_bounds = array<i64: 1, 3, 16, 64>}, {pipeline_mode = #tpu.pipeline_mode<synchronous>, transform_indices = @transform_1, window_bounds = array<i64: 32, 16>}, {transform_indices = @transform_2, window_bounds = array<i64: 1, 16, 64>}, {transform_indices = @transform_3, window_bounds = array<i64: 1, 2, 16, 16>}]} {
    %c0 = arith.constant 0 : index
    %c0_0 = arith.constant 0 : index
    %c0_1 = arith.constant 0 : index
    %c0_2 = arith.constant 0 : index
    %0 = vector.load %arg2[%c0, %c0_0, %c0_1, %c0_2] : memref<1x3x16x64xf32, #tpu.memory_space<vmem>>, vector<1x1x16x64xf32>
    %1 = vector.shape_cast %0 : vector<1x1x16x64xf32> to vector<16x64xf32>
    %cst = arith.constant 2.550000e+02 : f32
    %2 = vector.broadcast %cst : f32 to vector<16x64xf32>
    %3 = arith.mulf %1, %2 : vector<16x64xf32>
    %c0_3 = arith.constant 0 : index
    %c1 = arith.constant 1 : index
    %c0_4 = arith.constant 0 : index
    %c0_5 = arith.constant 0 : index
    %4 = vector.load %arg2[%c0_3, %c1, %c0_4, %c0_5] : memref<1x3x16x64xf32, #tpu.memory_space<vmem>>, vector<1x1x16x64xf32>
    %5 = vector.shape_cast %4 : vector<1x1x16x64xf32> to vector<16x64xf32>
    %cst_6 = arith.constant 2.550000e+02 : f32
    %6 = vector.broadcast %cst_6 : f32 to vector<16x64xf32>
    %7 = arith.mulf %5, %6 : vector<16x64xf32>
    %c0_7 = arith.constant 0 : index
    %c2 = arith.constant 2 : index
    %c0_8 = arith.constant 0 : index
    %c0_9 = arith.constant 0 : index
    %8 = vector.load %arg2[%c0_7, %c2, %c0_8, %c0_9] : memref<1x3x16x64xf32, #tpu.memory_space<vmem>>, vector<1x1x16x64xf32>
    %9 = vector.shape_cast %8 : vector<1x1x16x64xf32> to vector<16x64xf32>
    %cst_10 = arith.constant 2.550000e+02 : f32
    %10 = vector.broadcast %cst_10 : f32 to vector<16x64xf32>
    %11 = arith.mulf %9, %10 : vector<16x64xf32>
    %cst_11 = arith.constant 2.990000e-01 : f32
    %12 = vector.broadcast %cst_11 : f32 to vector<16x64xf32>
    %13 = arith.mulf %12, %3 : vector<16x64xf32>
    %cst_12 = arith.constant 5.870000e-01 : f32
    %14 = vector.broadcast %cst_12 : f32 to vector<16x64xf32>
    %15 = arith.mulf %14, %7 : vector<16x64xf32>
    %16 = arith.addf %13, %15 : vector<16x64xf32>
    %cst_13 = arith.constant 1.140000e-01 : f32
    %17 = vector.broadcast %cst_13 : f32 to vector<16x64xf32>
    %18 = arith.mulf %17, %11 : vector<16x64xf32>
    %19 = arith.addf %16, %18 : vector<16x64xf32>
    %c0_14 = arith.constant 0 : index
    %c0_15 = arith.constant 0 : index
    %c0_16 = arith.constant 0 : index
    %20 = vector.load %arg4[%c0_14, %c0_15, %c0_16] : memref<1x16x64xf32, #tpu.memory_space<vmem>>, vector<1x16x64xf32>
    %21 = vector.shape_cast %20 : vector<1x16x64xf32> to vector<16x64xf32>
    %22 = vector.shape_cast %19 : vector<16x64xf32> to vector<1x16x64xf32>
    tpu.vector_store %arg4[%c0_14, %c0_15, %c0_16], %22 {strides = array<i32>} : memref<1x16x64xf32, #tpu.memory_space<vmem>>, vector<1x16x64xf32>,
    %23 = vector.extract_strided_slice %3 {offsets = [0, 0], sizes = [16, 32], strides = [1, 1]} : vector<16x64xf32> to vector<16x32xf32>
    %24 = vector.extract_strided_slice %3 {offsets = [0, 32], sizes = [16, 32], strides = [1, 1]} : vector<16x64xf32> to vector<16x32xf32>
    %25 = arith.addf %23, %24 : vector<16x32xf32>
    %cst_17 = arith.constant 5.000000e-01 : f32
    %26 = vector.broadcast %cst_17 : f32 to vector<16x32xf32>
    %27 = arith.mulf %26, %25 : vector<16x32xf32>
    %28 = vector.extract_strided_slice %7 {offsets = [0, 0], sizes = [16, 32], strides = [1, 1]} : vector<16x64xf32> to vector<16x32xf32>
    %29 = vector.extract_strided_slice %7 {offsets = [0, 32], sizes = [16, 32], strides = [1, 1]} : vector<16x64xf32> to vector<16x32xf32>
    %30 = arith.addf %28, %29 : vector<16x32xf32>
    %cst_18 = arith.constant 5.000000e-01 : f32
    %31 = vector.broadcast %cst_18 : f32 to vector<16x32xf32>
    %32 = arith.mulf %31, %30 : vector<16x32xf32>
    %33 = vector.extract_strided_slice %11 {offsets = [0, 0], sizes = [16, 32], strides = [1, 1]} : vector<16x64xf32> to vector<16x32xf32>
    %34 = vector.extract_strided_slice %11 {offsets = [0, 32], sizes = [16, 32], strides = [1, 1]} : vector<16x64xf32> to vector<16x32xf32>
    %35 = arith.addf %33, %34 : vector<16x32xf32>
    %cst_19 = arith.constant 5.000000e-01 : f32
    %36 = vector.broadcast %cst_19 : f32 to vector<16x32xf32>
    %37 = arith.mulf %36, %35 : vector<16x32xf32>
    %cst_20 = arith.constant -1.687360e-01 : f32
    %38 = vector.broadcast %cst_20 : f32 to vector<16x32xf32>
    %39 = arith.mulf %38, %27 : vector<16x32xf32>
    %cst_21 = arith.constant 3.312640e-01 : f32
    %40 = vector.broadcast %cst_21 : f32 to vector<16x32xf32>
    %41 = arith.mulf %40, %32 : vector<16x32xf32>
    %42 = arith.subf %39, %41 : vector<16x32xf32>
    %cst_22 = arith.constant 5.000000e-01 : f32
    %43 = vector.broadcast %cst_22 : f32 to vector<16x32xf32>
    %44 = arith.mulf %43, %37 : vector<16x32xf32>
    %45 = arith.addf %42, %44 : vector<16x32xf32>
    %cst_23 = arith.constant 1.280000e+02 : f32
    %46 = vector.broadcast %cst_23 : f32 to vector<16x32xf32>
    %47 = arith.addf %45, %46 : vector<16x32xf32>
    %cst_24 = arith.constant 5.000000e-01 : f32
    %48 = vector.broadcast %cst_24 : f32 to vector<16x32xf32>
    %49 = arith.mulf %48, %27 : vector<16x32xf32>
    %cst_25 = arith.constant 4.186880e-01 : f32
    %50 = vector.broadcast %cst_25 : f32 to vector<16x32xf32>
    %51 = arith.mulf %50, %32 : vector<16x32xf32>
    %52 = arith.subf %49, %51 : vector<16x32xf32>
    %cst_26 = arith.constant 8.131200e-02 : f32
    %53 = vector.broadcast %cst_26 : f32 to vector<16x32xf32>
    %54 = arith.mulf %53, %37 : vector<16x32xf32>
    %55 = arith.subf %52, %54 : vector<16x32xf32>
    %cst_27 = arith.constant 1.280000e+02 : f32
    %56 = vector.broadcast %cst_27 : f32 to vector<16x32xf32>
    %57 = arith.addf %55, %56 : vector<16x32xf32>
    %c0_28 = arith.constant 0 : index
    %c0_29 = arith.constant 0 : index
    %58 = vector.load %arg3[%c0_28, %c0_29] : memref<32x16xf32, #tpu.memory_space<vmem>>, vector<32x16xf32>
    %cst_30 = arith.constant dense<0.000000e+00> : vector<16x16xf32>
    %59 = tpu.matmul %47, %58, %cst_30 {dimension_numbers = #tpu.dot_dimension_numbers<[1], [0], [0], [1], [0, 0, 1, 1], [], []>} : vector<16x32xf32>, vector<32x16xf32>, vector<16x16xf32> -> vector<16x16xf32>
    %c0_31 = arith.constant 0 : index
    %c0_32 = arith.constant 0 : index
    %c0_33 = arith.constant 0 : index
    %c0_34 = arith.constant 0 : index
    %60 = vector.load %arg5[%c0_31, %c0_32, %c0_33, %c0_34] : memref<1x2x16x16xf32, #tpu.memory_space<vmem>>, vector<1x1x16x16xf32>
    %61 = vector.shape_cast %60 : vector<1x1x16x16xf32> to vector<16x16xf32>
    %62 = vector.shape_cast %59 : vector<16x16xf32> to vector<1x1x16x16xf32>
    tpu.vector_store %arg5[%c0_31, %c0_32, %c0_33, %c0_34], %62 {strides = array<i32>} : memref<1x2x16x16xf32, #tpu.memory_space<vmem>>, vector<1x1x16x16xf32>,
    %c0_35 = arith.constant 0 : index
    %c0_36 = arith.constant 0 : index
    %63 = vector.load %arg3[%c0_35, %c0_36] : memref<32x16xf32, #tpu.memory_space<vmem>>, vector<32x16xf32>
    %cst_37 = arith.constant dense<0.000000e+00> : vector<16x16xf32>
    %64 = tpu.matmul %57, %63, %cst_37 {dimension_numbers = #tpu.dot_dimension_numbers<[1], [0], [0], [1], [0, 0, 1, 1], [], []>} : vector<16x32xf32>, vector<32x16xf32>, vector<16x16xf32> -> vector<16x16xf32>
    %c0_38 = arith.constant 0 : index
    %c1_39 = arith.constant 1 : index
    %c0_40 = arith.constant 0 : index
    %c0_41 = arith.constant 0 : index
    %65 = vector.load %arg5[%c0_38, %c1_39, %c0_40, %c0_41] : memref<1x2x16x16xf32, #tpu.memory_space<vmem>>, vector<1x1x16x16xf32>
    %66 = vector.shape_cast %65 : vector<1x1x16x16xf32> to vector<16x16xf32>
    %67 = vector.shape_cast %64 : vector<16x16xf32> to vector<1x1x16x16xf32>
    tpu.vector_store %arg5[%c0_38, %c1_39, %c0_40, %c0_41], %67 {strides = array<i32>} : memref<1x2x16x16xf32, #tpu.memory_space<vmem>>, vector<1x1x16x16xf32>,
    return
  }
  func.func @transform_0(%arg0: i32, %arg1: i32) -> (i32, i32, i32, i32) {
    %c0_i32 = arith.constant 0 : i32
    %c0_i32_0 = arith.constant 0 : i32
    %c0_i32_1 = arith.constant 0 : i32
    return %arg0, %c0_i32, %arg1, %c0_i32_0 : i32, i32, i32, i32
  }
  func.func @transform_1(%arg0: i32, %arg1: i32) -> (i32, i32) {
    %c0_i32 = arith.constant 0 : i32
    %c0_i32_0 = arith.constant 0 : i32
    %c0_i32_1 = arith.constant 0 : i32
    return %c0_i32, %c0_i32_0 : i32, i32
  }
  func.func @transform_2(%arg0: i32, %arg1: i32) -> (i32, i32, i32) {
    %c0_i32 = arith.constant 0 : i32
    %c0_i32_0 = arith.constant 0 : i32
    return %arg0, %arg1, %c0_i32 : i32, i32, i32
  }
  func.func @transform_3(%arg0: i32, %arg1: i32) -> (i32, i32, i32, i32) {
    %c0_i32 = arith.constant 0 : i32
    %c0_i32_0 = arith.constant 0 : i32
    %c0_i32_1 = arith.constant 0 : i32
    return %arg0, %c0_i32, %arg1, %c0_i32_0 : i32, i32, i32, i32
  }
}

module attributes {stable_mosaic.version = 11 : i64} {
  func.func @_jpeg_core_kernel(%arg0: i32, %arg1: memref<8x128xf32, #tpu.memory_space<vmem>>, %arg2: memref<128x128xf32, #tpu.memory_space<vmem>>, %arg3: memref<128x128xf32, #tpu.memory_space<vmem>>, %arg4: memref<8x128xf32, #tpu.memory_space<vmem>>) attributes {dimension_semantics = [#tpu.dimension_semantics<parallel>], iteration_bounds = array<i64: 1>, scalar_prefetch = 0 : i64, scratch_operands = 0 : i64, tpu.core_type = #tpu.core_type<tc>, window_params = [{transform_indices = @transform_0, window_bounds = array<i64: 8, 128>}, {pipeline_mode = #tpu.pipeline_mode<synchronous>, transform_indices = @transform_1, window_bounds = array<i64: 128, 128>}, {pipeline_mode = #tpu.pipeline_mode<synchronous>, transform_indices = @transform_2, window_bounds = array<i64: 128, 128>}, {transform_indices = @transform_3, window_bounds = array<i64: 8, 128>}]} {
    %c0 = arith.constant 0 : index
    %c0_0 = arith.constant 0 : index
    %0 = vector.load %arg1[%c0, %c0_0] : memref<8x128xf32, #tpu.memory_space<vmem>>, vector<8x128xf32>
    %cst = arith.constant 1.280000e+02 : f32
    %1 = vector.broadcast %cst : f32 to vector<8x128xf32>
    %2 = arith.subf %0, %1 : vector<8x128xf32>
    %c0_1 = arith.constant 0 : index
    %c0_2 = arith.constant 0 : index
    %3 = vector.load %arg2[%c0_1, %c0_2] : memref<128x128xf32, #tpu.memory_space<vmem>>, vector<128x128xf32>
    %cst_3 = arith.constant dense<0.000000e+00> : vector<8x128xf32>
    %4 = tpu.matmul %2, %3, %cst_3 {dimension_numbers = #tpu.dot_dimension_numbers<[1], [0], [0], [1], [0, 0, 1, 1], [], []>} : vector<8x128xf32>, vector<128x128xf32>, vector<8x128xf32> -> vector<8x128xf32>
    %5 = math.roundeven %4 : vector<8x128xf32>
    %6 = arith.subf %4, %5 : vector<8x128xf32>
    %7 = arith.mulf %6, %6 : vector<8x128xf32>
    %8 = arith.mulf %6, %7 : vector<8x128xf32>
    %9 = arith.addf %5, %8 : vector<8x128xf32>
    %c0_4 = arith.constant 0 : index
    %c0_5 = arith.constant 0 : index
    %10 = vector.load %arg3[%c0_4, %c0_5] : memref<128x128xf32, #tpu.memory_space<vmem>>, vector<128x128xf32>
    %cst_6 = arith.constant dense<0.000000e+00> : vector<8x128xf32>
    %11 = tpu.matmul %9, %10, %cst_6 {dimension_numbers = #tpu.dot_dimension_numbers<[1], [0], [0], [1], [0, 0, 1, 1], [], []>} : vector<8x128xf32>, vector<128x128xf32>, vector<8x128xf32> -> vector<8x128xf32>
    %cst_7 = arith.constant 1.280000e+02 : f32
    %12 = vector.broadcast %cst_7 : f32 to vector<8x128xf32>
    %13 = arith.addf %11, %12 : vector<8x128xf32>
    %c0_8 = arith.constant 0 : index
    %c0_9 = arith.constant 0 : index
    %14 = vector.load %arg4[%c0_8, %c0_9] : memref<8x128xf32, #tpu.memory_space<vmem>>, vector<8x128xf32>
    tpu.vector_store %arg4[%c0_8, %c0_9], %13 {strides = array<i32>} : memref<8x128xf32, #tpu.memory_space<vmem>>, vector<8x128xf32>,
    return
  }
  func.func @transform_0(%arg0: i32) -> (i32, i32) {
    %c0_i32 = arith.constant 0 : i32
    %c0_i32_0 = arith.constant 0 : i32
    return %arg0, %c0_i32 : i32, i32
  }
  func.func @transform_1(%arg0: i32) -> (i32, i32) {
    %c0_i32 = arith.constant 0 : i32
    %c0_i32_0 = arith.constant 0 : i32
    %c0_i32_1 = arith.constant 0 : i32
    return %c0_i32, %c0_i32_0 : i32, i32
  }
  func.func @transform_2(%arg0: i32) -> (i32, i32) {
    %c0_i32 = arith.constant 0 : i32
    %c0_i32_0 = arith.constant 0 : i32
    %c0_i32_1 = arith.constant 0 : i32
    return %c0_i32, %c0_i32_0 : i32, i32
  }
  func.func @transform_3(%arg0: i32) -> (i32, i32) {
    %c0_i32 = arith.constant 0 : i32
    %c0_i32_0 = arith.constant 0 : i32
    return %arg0, %c0_i32 : i32, i32
  }
}

module attributes {stable_mosaic.version = 11 : i64} {
  func.func @_jpeg_core_kernel(%arg0: i32, %arg1: memref<16x128xf32, #tpu.memory_space<vmem>>, %arg2: memref<128x128xf32, #tpu.memory_space<vmem>>, %arg3: memref<128x128xf32, #tpu.memory_space<vmem>>, %arg4: memref<16x128xf32, #tpu.memory_space<vmem>>) attributes {dimension_semantics = [#tpu.dimension_semantics<parallel>], iteration_bounds = array<i64: 1>, scalar_prefetch = 0 : i64, scratch_operands = 0 : i64, tpu.core_type = #tpu.core_type<tc>, window_params = [{transform_indices = @transform_0, window_bounds = array<i64: 16, 128>}, {pipeline_mode = #tpu.pipeline_mode<synchronous>, transform_indices = @transform_1, window_bounds = array<i64: 128, 128>}, {pipeline_mode = #tpu.pipeline_mode<synchronous>, transform_indices = @transform_2, window_bounds = array<i64: 128, 128>}, {transform_indices = @transform_3, window_bounds = array<i64: 16, 128>}]} {
    %c0 = arith.constant 0 : index
    %c0_0 = arith.constant 0 : index
    %0 = vector.load %arg1[%c0, %c0_0] : memref<16x128xf32, #tpu.memory_space<vmem>>, vector<16x128xf32>
    %cst = arith.constant 1.280000e+02 : f32
    %1 = vector.broadcast %cst : f32 to vector<16x128xf32>
    %2 = arith.subf %0, %1 : vector<16x128xf32>
    %c0_1 = arith.constant 0 : index
    %c0_2 = arith.constant 0 : index
    %3 = vector.load %arg2[%c0_1, %c0_2] : memref<128x128xf32, #tpu.memory_space<vmem>>, vector<128x128xf32>
    %cst_3 = arith.constant dense<0.000000e+00> : vector<16x128xf32>
    %4 = tpu.matmul %2, %3, %cst_3 {dimension_numbers = #tpu.dot_dimension_numbers<[1], [0], [0], [1], [0, 0, 1, 1], [], []>} : vector<16x128xf32>, vector<128x128xf32>, vector<16x128xf32> -> vector<16x128xf32>
    %5 = math.roundeven %4 : vector<16x128xf32>
    %6 = arith.subf %4, %5 : vector<16x128xf32>
    %7 = arith.mulf %6, %6 : vector<16x128xf32>
    %8 = arith.mulf %6, %7 : vector<16x128xf32>
    %9 = arith.addf %5, %8 : vector<16x128xf32>
    %c0_4 = arith.constant 0 : index
    %c0_5 = arith.constant 0 : index
    %10 = vector.load %arg3[%c0_4, %c0_5] : memref<128x128xf32, #tpu.memory_space<vmem>>, vector<128x128xf32>
    %cst_6 = arith.constant dense<0.000000e+00> : vector<16x128xf32>
    %11 = tpu.matmul %9, %10, %cst_6 {dimension_numbers = #tpu.dot_dimension_numbers<[1], [0], [0], [1], [0, 0, 1, 1], [], []>} : vector<16x128xf32>, vector<128x128xf32>, vector<16x128xf32> -> vector<16x128xf32>
    %cst_7 = arith.constant 1.280000e+02 : f32
    %12 = vector.broadcast %cst_7 : f32 to vector<16x128xf32>
    %13 = arith.addf %11, %12 : vector<16x128xf32>
    %c0_8 = arith.constant 0 : index
    %c0_9 = arith.constant 0 : index
    %14 = vector.load %arg4[%c0_8, %c0_9] : memref<16x128xf32, #tpu.memory_space<vmem>>, vector<16x128xf32>
    tpu.vector_store %arg4[%c0_8, %c0_9], %13 {strides = array<i32>} : memref<16x128xf32, #tpu.memory_space<vmem>>, vector<16x128xf32>,
    return
  }
  func.func @transform_0(%arg0: i32) -> (i32, i32) {
    %c0_i32 = arith.constant 0 : i32
    %c0_i32_0 = arith.constant 0 : i32
    return %arg0, %c0_i32 : i32, i32
  }
  func.func @transform_1(%arg0: i32) -> (i32, i32) {
    %c0_i32 = arith.constant 0 : i32
    %c0_i32_0 = arith.constant 0 : i32
    %c0_i32_1 = arith.constant 0 : i32
    return %c0_i32, %c0_i32_0 : i32, i32
  }
  func.func @transform_2(%arg0: i32) -> (i32, i32) {
    %c0_i32 = arith.constant 0 : i32
    %c0_i32_0 = arith.constant 0 : i32
    %c0_i32_1 = arith.constant 0 : i32
    return %c0_i32, %c0_i32_0 : i32, i32
  }
  func.func @transform_3(%arg0: i32) -> (i32, i32) {
    %c0_i32 = arith.constant 0 : i32
    %c0_i32_0 = arith.constant 0 : i32
    return %arg0, %c0_i32 : i32, i32
  }
}

module attributes {stable_mosaic.version = 11 : i64} {
  func.func @kernel(%arg0: i32, %arg1: i32, %arg2: memref<1x16x64xf32, #tpu.memory_space<vmem>>, %arg3: memref<1x2x16x16xf32, #tpu.memory_space<vmem>>, %arg4: memref<16x32xf32, #tpu.memory_space<vmem>>, %arg5: memref<1x3x16x64xf32, #tpu.memory_space<vmem>>) attributes {dimension_semantics = [#tpu.dimension_semantics<parallel>, #tpu.dimension_semantics<parallel>], iteration_bounds = array<i64: 2, 1>, scalar_prefetch = 0 : i64, scratch_operands = 0 : i64, tpu.core_type = #tpu.core_type<tc>, window_params = [{transform_indices = @transform_0, window_bounds = array<i64: 1, 16, 64>}, {transform_indices = @transform_1, window_bounds = array<i64: 1, 2, 16, 16>}, {pipeline_mode = #tpu.pipeline_mode<synchronous>, transform_indices = @transform_2, window_bounds = array<i64: 16, 32>}, {transform_indices = @transform_3, window_bounds = array<i64: 1, 3, 16, 64>}]} {
    %c0 = arith.constant 0 : index
    %c0_0 = arith.constant 0 : index
    %c0_1 = arith.constant 0 : index
    %c0_2 = arith.constant 0 : index
    %0 = vector.load %arg3[%c0, %c0_0, %c0_1, %c0_2] : memref<1x2x16x16xf32, #tpu.memory_space<vmem>>, vector<1x1x16x16xf32>
    %1 = vector.shape_cast %0 : vector<1x1x16x16xf32> to vector<16x16xf32>
    %cst = arith.constant 1.280000e+02 : f32
    %2 = vector.broadcast %cst : f32 to vector<16x16xf32>
    %3 = arith.subf %1, %2 : vector<16x16xf32>
    %c0_3 = arith.constant 0 : index
    %c0_4 = arith.constant 0 : index
    %4 = vector.load %arg4[%c0_3, %c0_4] : memref<16x32xf32, #tpu.memory_space<vmem>>, vector<16x32xf32>
    %cst_5 = arith.constant dense<0.000000e+00> : vector<16x32xf32>
    %5 = tpu.matmul %3, %4, %cst_5 {dimension_numbers = #tpu.dot_dimension_numbers<[1], [0], [0], [1], [0, 0, 1, 1], [], []>} : vector<16x16xf32>, vector<16x32xf32>, vector<16x32xf32> -> vector<16x32xf32>
    %c0_6 = arith.constant 0 : index
    %c1 = arith.constant 1 : index
    %c0_7 = arith.constant 0 : index
    %c0_8 = arith.constant 0 : index
    %6 = vector.load %arg3[%c0_6, %c1, %c0_7, %c0_8] : memref<1x2x16x16xf32, #tpu.memory_space<vmem>>, vector<1x1x16x16xf32>
    %7 = vector.shape_cast %6 : vector<1x1x16x16xf32> to vector<16x16xf32>
    %cst_9 = arith.constant 1.280000e+02 : f32
    %8 = vector.broadcast %cst_9 : f32 to vector<16x16xf32>
    %9 = arith.subf %7, %8 : vector<16x16xf32>
    %c0_10 = arith.constant 0 : index
    %c0_11 = arith.constant 0 : index
    %10 = vector.load %arg4[%c0_10, %c0_11] : memref<16x32xf32, #tpu.memory_space<vmem>>, vector<16x32xf32>
    %cst_12 = arith.constant dense<0.000000e+00> : vector<16x32xf32>
    %11 = tpu.matmul %9, %10, %cst_12 {dimension_numbers = #tpu.dot_dimension_numbers<[1], [0], [0], [1], [0, 0, 1, 1], [], []>} : vector<16x16xf32>, vector<16x32xf32>, vector<16x32xf32> -> vector<16x32xf32>
    %c0_13 = arith.constant 0 : index
    %c0_14 = arith.constant 0 : index
    %c0_15 = arith.constant 0 : index
    %12 = vector.load %arg2[%c0_13, %c0_14, %c0_15] : memref<1x16x64xf32, #tpu.memory_space<vmem>>, vector<1x16x64xf32>
    %13 = vector.shape_cast %12 : vector<1x16x64xf32> to vector<16x64xf32>
    %14 = vector.extract_strided_slice %13 {offsets = [0, 0], sizes = [16, 32], strides = [1, 1]} : vector<16x64xf32> to vector<16x32xf32>
    %cst_16 = arith.constant 1.402000e+00 : f32
    %15 = vector.broadcast %cst_16 : f32 to vector<16x32xf32>
    %16 = arith.mulf %15, %11 : vector<16x32xf32>
    %17 = arith.addf %14, %16 : vector<16x32xf32>
    %cst_17 = arith.constant 3.441360e-01 : f32
    %18 = vector.broadcast %cst_17 : f32 to vector<16x32xf32>
    %19 = arith.mulf %18, %5 : vector<16x32xf32>
    %20 = arith.subf %14, %19 : vector<16x32xf32>
    %cst_18 = arith.constant 7.141360e-01 : f32
    %21 = vector.broadcast %cst_18 : f32 to vector<16x32xf32>
    %22 = arith.mulf %21, %11 : vector<16x32xf32>
    %23 = arith.subf %20, %22 : vector<16x32xf32>
    %cst_19 = arith.constant 1.772000e+00 : f32
    %24 = vector.broadcast %cst_19 : f32 to vector<16x32xf32>
    %25 = arith.mulf %24, %5 : vector<16x32xf32>
    %26 = arith.addf %14, %25 : vector<16x32xf32>
    %27 = vector.extract_strided_slice %13 {offsets = [0, 32], sizes = [16, 32], strides = [1, 1]} : vector<16x64xf32> to vector<16x32xf32>
    %cst_20 = arith.constant 1.402000e+00 : f32
    %28 = vector.broadcast %cst_20 : f32 to vector<16x32xf32>
    %29 = arith.mulf %28, %11 : vector<16x32xf32>
    %30 = arith.addf %27, %29 : vector<16x32xf32>
    %cst_21 = arith.constant 3.441360e-01 : f32
    %31 = vector.broadcast %cst_21 : f32 to vector<16x32xf32>
    %32 = arith.mulf %31, %5 : vector<16x32xf32>
    %33 = arith.subf %27, %32 : vector<16x32xf32>
    %cst_22 = arith.constant 7.141360e-01 : f32
    %34 = vector.broadcast %cst_22 : f32 to vector<16x32xf32>
    %35 = arith.mulf %34, %11 : vector<16x32xf32>
    %36 = arith.subf %33, %35 : vector<16x32xf32>
    %cst_23 = arith.constant 1.772000e+00 : f32
    %37 = vector.broadcast %cst_23 : f32 to vector<16x32xf32>
    %38 = arith.mulf %37, %5 : vector<16x32xf32>
    %39 = arith.addf %27, %38 : vector<16x32xf32>
    %40 = tpu.concatenate %17, %30 in 1 : vector<16x32xf32>, vector<16x32xf32> -> vector<16x64xf32>
    %cst_24 = arith.constant 0.000000e+00 : f32
    %41 = vector.broadcast %cst_24 : f32 to vector<16x64xf32>
    %42 = arith.maximumf %41, %40 : vector<16x64xf32>
    %cst_25 = arith.constant 2.550000e+02 : f32
    %43 = vector.broadcast %cst_25 : f32 to vector<16x64xf32>
    %44 = arith.minimumf %43, %42 : vector<16x64xf32>
    %cst_26 = arith.constant 0.00392156886 : f32
    %45 = vector.broadcast %cst_26 : f32 to vector<16x64xf32>
    %46 = arith.mulf %44, %45 : vector<16x64xf32>
    %c0_27 = arith.constant 0 : index
    %c0_28 = arith.constant 0 : index
    %c0_29 = arith.constant 0 : index
    %c0_30 = arith.constant 0 : index
    %47 = vector.load %arg5[%c0_27, %c0_28, %c0_29, %c0_30] : memref<1x3x16x64xf32, #tpu.memory_space<vmem>>, vector<1x1x16x64xf32>
    %48 = vector.shape_cast %47 : vector<1x1x16x64xf32> to vector<16x64xf32>
    %49 = vector.shape_cast %46 : vector<16x64xf32> to vector<1x1x16x64xf32>
    tpu.vector_store %arg5[%c0_27, %c0_28, %c0_29, %c0_30], %49 {strides = array<i32>} : memref<1x3x16x64xf32, #tpu.memory_space<vmem>>, vector<1x1x16x64xf32>,
    %50 = tpu.concatenate %23, %36 in 1 : vector<16x32xf32>, vector<16x32xf32> -> vector<16x64xf32>
    %cst_31 = arith.constant 0.000000e+00 : f32
    %51 = vector.broadcast %cst_31 : f32 to vector<16x64xf32>
    %52 = arith.maximumf %51, %50 : vector<16x64xf32>
    %cst_32 = arith.constant 2.550000e+02 : f32
    %53 = vector.broadcast %cst_32 : f32 to vector<16x64xf32>
    %54 = arith.minimumf %53, %52 : vector<16x64xf32>
    %cst_33 = arith.constant 0.00392156886 : f32
    %55 = vector.broadcast %cst_33 : f32 to vector<16x64xf32>
    %56 = arith.mulf %54, %55 : vector<16x64xf32>
    %c0_34 = arith.constant 0 : index
    %c1_35 = arith.constant 1 : index
    %c0_36 = arith.constant 0 : index
    %c0_37 = arith.constant 0 : index
    %57 = vector.load %arg5[%c0_34, %c1_35, %c0_36, %c0_37] : memref<1x3x16x64xf32, #tpu.memory_space<vmem>>, vector<1x1x16x64xf32>
    %58 = vector.shape_cast %57 : vector<1x1x16x64xf32> to vector<16x64xf32>
    %59 = vector.shape_cast %56 : vector<16x64xf32> to vector<1x1x16x64xf32>
    tpu.vector_store %arg5[%c0_34, %c1_35, %c0_36, %c0_37], %59 {strides = array<i32>} : memref<1x3x16x64xf32, #tpu.memory_space<vmem>>, vector<1x1x16x64xf32>,
    %60 = tpu.concatenate %26, %39 in 1 : vector<16x32xf32>, vector<16x32xf32> -> vector<16x64xf32>
    %cst_38 = arith.constant 0.000000e+00 : f32
    %61 = vector.broadcast %cst_38 : f32 to vector<16x64xf32>
    %62 = arith.maximumf %61, %60 : vector<16x64xf32>
    %cst_39 = arith.constant 2.550000e+02 : f32
    %63 = vector.broadcast %cst_39 : f32 to vector<16x64xf32>
    %64 = arith.minimumf %63, %62 : vector<16x64xf32>
    %cst_40 = arith.constant 0.00392156886 : f32
    %65 = vector.broadcast %cst_40 : f32 to vector<16x64xf32>
    %66 = arith.mulf %64, %65 : vector<16x64xf32>
    %c0_41 = arith.constant 0 : index
    %c2 = arith.constant 2 : index
    %c0_42 = arith.constant 0 : index
    %c0_43 = arith.constant 0 : index
    %67 = vector.load %arg5[%c0_41, %c2, %c0_42, %c0_43] : memref<1x3x16x64xf32, #tpu.memory_space<vmem>>, vector<1x1x16x64xf32>
    %68 = vector.shape_cast %67 : vector<1x1x16x64xf32> to vector<16x64xf32>
    %69 = vector.shape_cast %66 : vector<16x64xf32> to vector<1x1x16x64xf32>
    tpu.vector_store %arg5[%c0_41, %c2, %c0_42, %c0_43], %69 {strides = array<i32>} : memref<1x3x16x64xf32, #tpu.memory_space<vmem>>, vector<1x1x16x64xf32>,
    return
  }
  func.func @transform_0(%arg0: i32, %arg1: i32) -> (i32, i32, i32) {
    %c0_i32 = arith.constant 0 : i32
    %c0_i32_0 = arith.constant 0 : i32
    return %arg0, %arg1, %c0_i32 : i32, i32, i32
  }
  func.func @transform_1(%arg0: i32, %arg1: i32) -> (i32, i32, i32, i32) {
    %c0_i32 = arith.constant 0 : i32
    %c0_i32_0 = arith.constant 0 : i32
    %c0_i32_1 = arith.constant 0 : i32
    return %arg0, %c0_i32, %arg1, %c0_i32_0 : i32, i32, i32, i32
  }
  func.func @transform_2(%arg0: i32, %arg1: i32) -> (i32, i32) {
    %c0_i32 = arith.constant 0 : i32
    %c0_i32_0 = arith.constant 0 : i32
    %c0_i32_1 = arith.constant 0 : i32
    return %c0_i32, %c0_i32_0 : i32, i32
  }
  func.func @transform_3(%arg0: i32, %arg1: i32) -> (i32, i32, i32, i32) {
    %c0_i32 = arith.constant 0 : i32
    %c0_i32_0 = arith.constant 0 : i32
    %c0_i32_1 = arith.constant 0 : i32
    return %arg0, %c0_i32, %arg1, %c0_i32_0 : i32, i32, i32, i32
  }
}

</mosaic_0001>

<llo_original>
// kernel: _lambda_.6
$region0: #{_lambda_.6}
  #allocation0 [shape = 'u32[]', space=smem, size = 0x4, offset = 0x4, fixed_abs, tag = 'smem constant byte address 0x4 - core index']
  #allocation1 [shape = 'u32[72,128]{1,0:T(1,128)}', space=vmem, size = 0x9000, scoped, tag = 'internal scratch']
  %s0 = inlined_call_operand.vmem [shape: f32[8,128], index: 0, kind: input, shape index: {}]
  %s1 = inlined_call_operand.vmem [shape: f32[128,128], index: 1, kind: input, shape index: {}]
  %s2 = inlined_call_operand.vmem [shape: f32[128,128], index: 2, kind: input, shape index: {}]
  %s3 = inlined_call_operand.vmem [shape: f32[8,128], index: 3, kind: output, shape index: {}]
  %s4 = sld [smem:[#allocation0]]
  $region22: #{_lambda_.6} parent=0
    _
  %s6 = ssub.s32 1, %s4
  %s7 = scalar_select 0, %s6, %s4
  // Predicated region
  $region2: #{_lambda_.6} parent=0 // pred_check
    _
  $region3: #{_lambda_.6} parent=0 // pred_check_branch
    %9 = sbr.rel (0) target = $region5
  $region4: #{_lambda_.6} parent=0 // pred_region
    _
  $region5: #{_lambda_.6} parent=0 // pred_fallthru
    _
  // Predicated region
  $region6: #{_lambda_.6} parent=0 // pred_check
    _
  $region7: #{_lambda_.6} parent=0 // pred_check_branch
    %11 = sbr.rel (0) target = $region9
  $region8: #{_lambda_.6} parent=0 // pred_region
    _
  $region9: #{_lambda_.6} parent=0 // pred_fallthru
    _
  // Predicated region
  $region10: #{_lambda_.6} parent=0 // pred_check
    _
  $region11: #{_lambda_.6} parent=0 // pred_check_branch
    %13 = sbr.rel (0) target = $region13
  $region12: #{_lambda_.6} parent=0 // pred_region
    _
  $region13: #{_lambda_.6} parent=0 // pred_fallthru
    _
  %v14 = vld [vmem:[%s0] sm:$0xff]
  %v15 = vsub.f32 %v14, 128.0
  %v16 = vld [vmem:[%s1] sm:$0xff]
  %v17 = vld [vmem:[%s1 + $0x8] sm:$0xff]
  %v18 = vld [vmem:[%s1 + $0x10] sm:$0xff]
  %v19 = vld [vmem:[%s1 + $0x18] sm:$0xff]
  %v20 = vld [vmem:[%s1 + $0x20] sm:$0xff]
  %v21 = vld [vmem:[%s1 + $0x28] sm:$0xff]
  %v22 = vld [vmem:[%s1 + $0x30] sm:$0xff]
  %v23 = vld [vmem:[%s1 + $0x38] sm:$0xff]
  %v24 = vld [vmem:[%s1 + $0x40] sm:$0xff]
  %v25 = vld [vmem:[%s1 + $0x48] sm:$0xff]
  %v26 = vld [vmem:[%s1 + $0x50] sm:$0xff]
  %v27 = vld [vmem:[%s1 + $0x58] sm:$0xff]
  %v28 = vld [vmem:[%s1 + $0x60] sm:$0xff]
  %v29 = vld [vmem:[%s1 + $0x68] sm:$0xff]
  %v30 = vld [vmem:[%s1 + $0x70] sm:$0xff]
  %v31 = vld [vmem:[%s1 + $0x78] sm:$0xff]
  %32 = vmatpush.msra.mxu0 %v31
  %33 = vmatpush.msra.mxu0 %v30
  %34 = vmatpush.msra.mxu0 %v29
  %35 = vmatpush.msra.mxu0 %v28
  %36 = vmatpush.msra.mxu0 %v27
  %37 = vmatpush.msra.mxu0 %v26
  %38 = vmatpush.msra.mxu0 %v25
  %39 = vmatpush.msra.mxu0 %v24
  %40 = vmatpush.msra.mxu0 %v23
  %41 = vmatpush.msra.mxu0 %v22
  %42 = vmatpush.msra.mxu0 %v21
  %43 = vmatpush.msra.mxu0 %v20
  %44 = vmatpush.msra.mxu0 %v19
  %45 = vmatpush.msra.mxu0 %v18
  %46 = vmatpush.msra.mxu0 %v17
  %47 = vmatpush.msra.mxu0 %v16
  %48 = vmatmul.f32.gmra.mxu0 %v15
  %v49 = vpop.f32.mrf.mxu0
  %v50 = vadd.f32 0.0, %v49
  %51 = vdwg.mxu0
  %v52 = vround.ne.pseudo %v50
  %v53 = vsub.f32 %v50, %v52
  %v54 = vmul.f32 %v53, %v53
  %v55 = vmul.f32 %v53, %v54
  %v56 = vadd.f32 %v52, %v55
  %v57 = vld [vmem:[%s2] sm:$0xff]
  %v58 = vld [vmem:[%s2 + $0x8] sm:$0xff]
  %v59 = vld [vmem:[%s2 + $0x10] sm:$0xff]
  %v60 = vld [vmem:[%s2 + $0x18] sm:$0xff]
  %v61 = vld [vmem:[%s2 + $0x20] sm:$0xff]
  %v62 = vld [vmem:[%s2 + $0x28] sm:$0xff]
  %v63 = vld [vmem:[%s2 + $0x30] sm:$0xff]
  %v64 = vld [vmem:[%s2 + $0x38] sm:$0xff]
  %v65 = vld [vmem:[%s2 + $0x40] sm:$0xff]
  %v66 = vld [vmem:[%s2 + $0x48] sm:$0xff]
  %v67 = vld [vmem:[%s2 + $0x50] sm:$0xff]
  %v68 = vld [vmem:[%s2 + $0x58] sm:$0xff]
  %v69 = vld [vmem:[%s2 + $0x60] sm:$0xff]
  %v70 = vld [vmem:[%s2 + $0x68] sm:$0xff]
  %v71 = vld [vmem:[%s2 + $0x70] sm:$0xff]
  %v72 = vld [vmem:[%s2 + $0x78] sm:$0xff]
  %73 = vmatpush.msra.mxu0 %v72
  %74 = vmatpush.msra.mxu0 %v71
  %75 = vmatpush.msra.mxu0 %v70
  %76 = vmatpush.msra.mxu0 %v69
  %77 = vmatpush.msra.mxu0 %v68
  %78 = vmatpush.msra.mxu0 %v67
  %79 = vmatpush.msra.mxu0 %v66
  %80 = vmatpush.msra.mxu0 %v65
  %81 = vmatpush.msra.mxu0 %v64
  %82 = vmatpush.msra.mxu0 %v63
  %83 = vmatpush.msra.mxu0 %v62
  %84 = vmatpush.msra.mxu0 %v61
  %85 = vmatpush.msra.mxu0 %v60
  %86 = vmatpush.msra.mxu0 %v59
  %87 = vmatpush.msra.mxu0 %v58
  %88 = vmatpush.msra.mxu0 %v57
  %89 = vmatmul.f32.gmra.mxu0 %v56
  %v90 = vpop.f32.mrf.mxu0
  %v91 = vadd.f32 128.0, %v90
  %92 = vdwg.mxu0
  %93 = vst [vmem:[%s3] sm:$0xff] %v91
  // Predicated region
  $region14: #{_lambda_.6} parent=0 // pred_check
    _
  $region15: #{_lambda_.6} parent=0 // pred_check_branch
    %95 = sbr.rel (0) target = $region17
  $region16: #{_lambda_.6} parent=0 // pred_region
    _
  $region17: #{_lambda_.6} parent=0 // pred_fallthru
    _
  // Predicated region
  $region18: #{_lambda_.6} parent=0 // pred_check
    _
  $region19: #{_lambda_.6} parent=0 // pred_check_branch
    %97 = sbr.rel (0) target = $region21
  $region20: #{_lambda_.6} parent=0 // pred_region
    _
  $region21: #{_lambda_.6} parent=0 // pred_fallthru
    _

// kernel: _lambda_.4
$region0: #{_lambda_.4}
  #allocation0 [shape = 'u32[]', space=smem, size = 0x4, offset = 0x4, fixed_abs, tag = 'smem constant byte address 0x4 - core index']
  #allocation1 [shape = 'u32[72,128]{1,0:T(1,128)}', space=vmem, size = 0x9000, scoped, tag = 'internal scratch']
  %s0 = inlined_call_operand.vmem [shape: f32[2,3,16,64], index: 0, kind: input, shape index: {}]
  %s1 = inlined_call_operand.vmem [shape: f32[32,16], index: 1, kind: input, shape index: {}]
  %s2 = inlined_call_operand.vmem [shape: f32[2,16,64], index: 2, kind: output, shape index: {0}]
  %s3 = inlined_call_operand.vmem [shape: f32[2,2,16,16], index: 3, kind: output, shape index: {1}]
  %4 = xla_tuple %s2, %s3
  %s5 = sld [smem:[#allocation0]]
  $region49: #{_lambda_.4} parent=0
    _
  %s7 = ssub.s32 1, %s5
  %s8 = scalar_select 0, %s7, %s5
  loop: start=0, step=1, limit=4
  $region2: #{_lambda_.4} parent=0 // loop_pre_header
    _
  $region3: #{_lambda_.4} parent=0 // loop_header
    %s10 = sphi 0, %s14
    %p11 = scmp.ge.s32.totalorder %s10, 4
    %s17 = sphi 0, %s29
    %s18 = sphi 0, %s25
    %s19 = sphi 0, %s17
    %s20 = sphi 0, %s18
    %s21 = sphi 0, %s19
    %s22 = sphi 0, %s20
    %s34 = sphi 0, %s36
    %s37 = sphi 0, %s34
    %s38 = sphi 0, %s37
    %s54 = sphi 0, %s38
    %s58 = sphi 0, %s58
    %s60 = sphi 0, %s58
    %s61 = sphi 0, %s60
    %s75 = sphi 0, %s61
    %s83 = sphi 0, %s85
    %s86 = sphi 0, %s83
    %s87 = sphi 0, %s86
    %s103 = sphi 0, %s87
    %s111 = sphi 0, %s113
    %s114 = sphi 0, %s111
    %s115 = sphi 0, %s114
    %s131 = sphi 0, %s115
  $region4: #{_lambda_.4} parent=0 // loop_header_branch
    %13 = sbr.rel (%p11) target = $region8
  $region5: #{_lambda_.4} parent=0 // loop_body
    %s15 = ssub.s32 %s10, 1
    %s16 = ssub.s32 %s10, 2
    %s23 = sadd.s32 1, %s18
    %p24 = scmp.ge.s32.totalorder %s23, 1
    %s25 = scalar_select %p24, 0, %s23
    %s26 = sadd.s32 1, %s17
    %s27 = scalar_select %p24, %s26, %s17
    %p28 = scmp.ge.s32.totalorder %s27, 2
    %s29 = scalar_select %p28, 0, %s27
    %s30 = ssub.s32 %s17, %s29
    %s31 = ssub.s32 %s18, %s25
    %s32 = sor.u32 %s30, %s31
    %p33 = scmp.eq.s32.totalorder %s32, 0
    %s35 = sadd.s32 %s34, 1
    %s36 = scalar_select %p33, %s34, %s35
    %p39 = pneg %p33
    %p40 = scmp.eq.s32.totalorder %s10, 1
    %p41 = por %p39, %p40
    %p42 = scmp.ne.s32.totalorder %s34, %s37
    %p43 = scmp.eq.s32.totalorder %s10, 0
    %p44 = por %p42, %p43
    %p45 = scmp.ne.s32.totalorder %s34, %s37
    %p46 = scmp.eq.s32.totalorder %s15, 1
    %p47 = por %p45, %p46
    %p48 = scmp.ne.s32.totalorder %s37, %s38
    %p49 = scmp.eq.s32.totalorder %s15, 0
    %p50 = por %p48, %p49
    %p51 = scmp.ne.s32.totalorder %s37, %s38
    %p52 = scmp.eq.s32.totalorder %s16, 1
    %p53 = por %p51, %p52
    %p55 = scmp.ne.s32.totalorder %s38, %s54
    %p56 = scmp.eq.s32.totalorder %s16, 0
    %p57 = por %p55, %p56
    %s59 = sadd.s32 %s58, 1
    %p62 = scmp.eq.s32.totalorder %s10, 1
    %p63 = scmp.ne.s32.totalorder %s58, %s60
    %p64 = scmp.eq.s32.totalorder %s10, 0
    %p65 = por %p63, %p64
    %p66 = scmp.ne.s32.totalorder %s58, %s60
    %p67 = scmp.eq.s32.totalorder %s15, 1
    %p68 = por %p66, %p67
    %p69 = scmp.ne.s32.totalorder %s60, %s61
    %p70 = scmp.eq.s32.totalorder %s15, 0
    %p71 = por %p69, %p70
    %p72 = scmp.ne.s32.totalorder %s60, %s61
    %p73 = scmp.eq.s32.totalorder %s16, 1
    %p74 = por %p72, %p73
    %p76 = scmp.ne.s32.totalorder %s61, %s75
    %p77 = scmp.eq.s32.totalorder %s16, 0
    %p78 = por %p76, %p77
    %s79 = ssub.s32 %s17, %s29
    %s80 = ssub.s32 %s18, %s25
    %s81 = sor.u32 %s79, %s80
    %p82 = scmp.eq.s32.totalorder %s81, 0
    %s84 = sadd.s32 %s83, 1
    %s85 = scalar_select %p82, %s83, %s84
    %p88 = pneg %p82
    %p89 = scmp.eq.s32.totalorder %s10, 1
    %p90 = por %p88, %p89
    %p91 = scmp.ne.s32.totalorder %s83, %s86
    %p92 = scmp.eq.s32.totalorder %s10, 0
    %p93 = por %p91, %p92
    %p94 = scmp.ne.s32.totalorder %s83, %s86
    %p95 = scmp.eq.s32.totalorder %s15, 1
    %p96 = por %p94, %p95
    %p97 = scmp.ne.s32.totalorder %s86, %s87
    %p98 = scmp.eq.s32.totalorder %s15, 0
    %p99 = por %p97, %p98
    %p100 = scmp.ne.s32.totalorder %s86, %s87
    %p101 = scmp.eq.s32.totalorder %s16, 1
    %p102 = por %p100, %p101
    %p104 = scmp.ne.s32.totalorder %s87, %s103
    %p105 = scmp.eq.s32.totalorder %s16, 0
    %p106 = por %p104, %p105
    %s107 = ssub.s32 %s17, %s29
    %s108 = ssub.s32 %s18, %s25
    %s109 = sor.u32 %s107, %s108
    %p110 = scmp.eq.s32.totalorder %s109, 0
    %s112 = sadd.s32 %s111, 1
    %s113 = scalar_select %p110, %s111, %s112
    %p116 = pneg %p110
    %p117 = scmp.eq.s32.totalorder %s10, 1
    %p118 = por %p116, %p117
    %p119 = scmp.ne.s32.totalorder %s111, %s114
    %p120 = scmp.eq.s32.totalorder %s10, 0
    %p121 = por %p119, %p120
    %p122 = scmp.ne.s32.totalorder %s111, %s114
    %p123 = scmp.eq.s32.totalorder %s15, 1
    %p124 = por %p122, %p123
    %p125 = scmp.ne.s32.totalorder %s114, %s115
    %p126 = scmp.eq.s32.totalorder %s15, 0
    %p127 = por %p125, %p126
    %p128 = scmp.ne.s32.totalorder %s114, %s115
    %p129 = scmp.eq.s32.totalorder %s16, 1
    %p130 = por %p128, %p129
    %p132 = scmp.ne.s32.totalorder %s115, %s131
    %p133 = scmp.eq.s32.totalorder %s16, 0
    %p134 = por %p132, %p133
    %p135 = scmp.le.s32.totalorder 1, %s10
    %p136 = scmp.lt.s32.totalorder %s10, 3
    %p137 = pnand %p135, %p136
    %p138 = pneg %p137
    // Predicated region
    $region9: #{_lambda_.4} parent=5 // pred_check
      _
    $region10: #{_lambda_.4} parent=5 // pred_check_branch
      %140 = sbr.rel (%p137) target = $region12
    $region11: #{_lambda_.4} parent=5 // pred_region
      %s141 = ssub.s32 %s10, 1
      // Predicated region
      $region13: #{_lambda_.4} parent=11 // pred_check
        %p142 = pneg %p71
      $region14: #{_lambda_.4} parent=11 // pred_check_branch
        %144 = sbr.rel (%p142) target = $region16
      $region15: #{_lambda_.4} parent=11 // pred_region
        _
      $region16: #{_lambda_.4} parent=11 // pred_fallthru
        _
    $region12: #{_lambda_.4} parent=5 // pred_fallthru
      _
    %p145 = scmp.lt.s32.totalorder %s10, 2
    // Predicated region
    $region17: #{_lambda_.4} parent=5 // pred_check
      %p146 = pneg %p145
    $region18: #{_lambda_.4} parent=5 // pred_check_branch
      %148 = sbr.rel (%p146) target = $region20
    $region19: #{_lambda_.4} parent=5 // pred_region
      // Predicated region
      $region21: #{_lambda_.4} parent=19 // pred_check
        %p149 = pneg %p44
      $region22: #{_lambda_.4} parent=19 // pred_check_branch
        %151 = sbr.rel (%p149) target = $region24
      $region23: #{_lambda_.4} parent=19 // pred_region
        %s152 = smul.u32 2, %s18
        %p153 = scmp.lt.s32.totalorder %s17, 1
        %s154 = scalar_select %p153, %s17, 1
        %p155 = scmp.lt.s32.totalorder %s152, 1
        %s156 = scalar_select %p155, %s152, 1
        %s157 = smul.addr %s154, 6
        %s158 = sadd.s32 %s156, %s157
        %s159 = smul.addr %s158, 8
        %s160 = scalar_lea.vmem %s0, %s159
        %s161 = smul.u32 2, %s18
      $region24: #{_lambda_.4} parent=19 // pred_fallthru
        _
    $region20: #{_lambda_.4} parent=5 // pred_fallthru
      _
    %p162 = scmp.le.s32.totalorder 1, %s10
    %p163 = scmp.lt.s32.totalorder %s10, 3
    %p164 = pnand %p162, %p163
    %p165 = pneg %p164
    // Predicated region
    $region25: #{_lambda_.4} parent=5 // pred_check
      _
    $region26: #{_lambda_.4} parent=5 // pred_check_branch
      %167 = sbr.rel (%p164) target = $region28
    $region27: #{_lambda_.4} parent=5 // pred_region
      %s168 = ssub.s32 %s10, 1
      %s169 = smul.u32 2, %s20
      %p170 = scmp.lt.s32.totalorder %s19, 1
      %s171 = scalar_select %p170, %s19, 1
      %p172 = scmp.lt.s32.totalorder %s169, 1
      %s173 = scalar_select %p172, %s169, 1
      %s174 = smul.addr %s171, 6
      %s175 = sadd.s32 %s173, %s174
      %s176 = smul.addr %s175, 8
      %s177 = scalar_lea.vmem %s0, %s176
      %p178 = pneg %p50
      %p179 = pneg %p47
      %p180 = pneg %p71
      %p181 = pneg %p68
      %p182 = pneg %p99
      %p183 = pneg %p96
      %s184 = smul.u32 2, %s20
      %p185 = scmp.lt.s32.totalorder %s19, 1
      %s186 = scalar_select %p185, %s19, 1
      %p187 = scmp.lt.s32.totalorder %s184, 1
      %s188 = scalar_select %p187, %s184, 1
      %s189 = smul.addr %s186, 2
      %s190 = sadd.s32 %s188, %s189
      %s191 = smul.addr %s190, 8
      %s192 = scalar_lea.vmem %s2, %s191
      %p193 = pneg %p127
      %p194 = pneg %p124
      %s195 = smul.u32 2, %s20
      %p196 = scmp.lt.s32.totalorder %s19, 1
      %s197 = scalar_select %p196, %s19, 1
      %p198 = scmp.lt.s32.totalorder %s195, 1
      %s199 = scalar_select %p198, %s195, 1
      %s200 = smul.addr %s197, 4
      %s201 = sadd.s32 %s199, %s200
      %s202 = smul.addr %s201, 8
      %s203 = scalar_lea.vmem %s3, %s202
      %s204 = smul.u32 2, %s20
      %p205 = scmp.lt.s32.totalorder %s19, 1
      %s206 = scalar_select %p205, %s19, 1
      %p207 = scmp.lt.s32.totalorder %s204, 1
      %s208 = scalar_select %p207, %s204, 1
      %s209 = smul.addr %s206, 6
      %s210 = sadd.s32 %s208, %s209
      %s211 = smul.addr %s210, 8
      %s212 = scalar_lea.vmem %s0, %s211
      %s213 = smul.u32 2, %s20
      %s214 = smul.u32 2, %s20
      %p215 = scmp.lt.s32.totalorder %s19, 1
      %s216 = scalar_select %p215, %s19, 1
      %p217 = scmp.lt.s32.totalorder %s214, 1
      %s218 = scalar_select %p217, %s214, 1
      %s219 = smul.addr %s216, 2
      %s220 = sadd.s32 %s218, %s219
      %s221 = smul.addr %s220, 8
      %s222 = scalar_lea.vmem %s2, %s221
      %s223 = smul.u32 2, %s20
      %s224 = smul.u32 2, %s20
      %p225 = scmp.lt.s32.totalorder %s19, 1
      %s226 = scalar_select %p225, %s19, 1
      %p227 = scmp.lt.s32.totalorder %s224, 1
      %s228 = scalar_select %p227, %s224, 1
      %s229 = smul.addr %s226, 4
      %s230 = sadd.s32 %s228, %s229
      %s231 = smul.addr %s230, 8
      %s232 = scalar_lea.vmem %s3, %s231
      %s233 = smul.u32 2, %s20
      %v234 = vld [vmem:[%s212] sm:$0xff]
      %v235 = vld [vmem:[%s212 + $0x8] sm:$0xff]
      %v236 = vmul.f32 %v234, 255.0
      %v237 = vmul.f32 %v235, 255.0
      %s238 = scalar_lea.vmem %s212, 16
      %v239 = vld [vmem:[%s238] sm:$0xff]
      %v240 = vld [vmem:[%s238 + $0x8] sm:$0xff]
      %v241 = vmul.f32 %v239, 255.0
      %v242 = vmul.f32 %v240, 255.0
      %s243 = scalar_lea.vmem %s212, 32
      %v244 = vld [vmem:[%s243] sm:$0xff]
      %v245 = vld [vmem:[%s243 + $0x8] sm:$0xff]
      %v246 = vmul.f32 %v244, 255.0
      %v247 = vmul.f32 %v245, 255.0
      %v248 = vmul.f32 %v236, 0.299
      %v249 = vmul.f32 %v237, 0.299
      %v250 = vmul.f32 %v241, 0.587
      %v251 = vmul.f32 %v242, 0.587
      %v252 = vadd.f32 %v248, %v250
      %v253 = vadd.f32 %v249, %v251
      %v254 = vmul.f32 %v246, 0.114
      %v255 = vmul.f32 %v247, 0.114
      %v256 = vadd.f32 %v252, %v254
      %v257 = vadd.f32 %v253, %v255
      %vm258 = vcmask 523264
      %259 = vst.msk [vmem:[%s222] sm:$0xff] %vm258, %v256
      %260 = vst.msk [vmem:[%s222 + $0x8] sm:$0xff] %vm258, %v257
      %263 = vrot.lane.b32.xlu0 %v236, 96
      %v264 = vpop.permute.xlu0 %263
      %265 = vrot.lane.b32.xlu0 %v237, 96
      %v266 = vpop.permute.xlu0 %265
      %v269 = vadd.f32 %v236, %v264
      %v270 = vadd.f32 %v237, %v266
      %v271 = vmul.f32 %v269, 0.5
      %v272 = vmul.f32 %v270, 0.5
      %275 = vrot.lane.b32.xlu0 %v241, 96
      %v276 = vpop.permute.xlu0 %275
      %277 = vrot.lane.b32.xlu0 %v242, 96
      %v278 = vpop.permute.xlu0 %277
      %v281 = vadd.f32 %v241, %v276
      %v282 = vadd.f32 %v242, %v278
      %v283 = vmul.f32 %v281, 0.5
      %v284 = vmul.f32 %v282, 0.5
      %287 = vrot.lane.b32.xlu0 %v246, 96
      %v288 = vpop.permute.xlu0 %287
      %289 = vrot.lane.b32.xlu0 %v247, 96
      %v290 = vpop.permute.xlu0 %289
      %v293 = vadd.f32 %v246, %v288
      %v294 = vadd.f32 %v247, %v290
      %v295 = vmul.f32 %v293, 0.5
      %v296 = vmul.f32 %v294, 0.5
      %v297 = vmul.f32 %v271, -0.168736
      %v298 = vmul.f32 %v272, -0.168736
      %v299 = vmul.f32 %v283, 0.331264
      %v300 = vmul.f32 %v284, 0.331264
      %v301 = vsub.f32 %v297, %v299
      %v302 = vsub.f32 %v298, %v300
      %v303 = vmul.f32 %v295, 0.5
      %v304 = vmul.f32 %v296, 0.5
      %v305 = vadd.f32 %v301, %v303
      %v306 = vadd.f32 %v302, %v304
      %v307 = vadd.f32 %v305, 128.0
      %v308 = vadd.f32 %v306, 128.0
      %v309 = vmul.f32 %v271, 0.5
      %v310 = vmul.f32 %v272, 0.5
      %v311 = vmul.f32 %v283, 0.418688
      %v312 = vmul.f32 %v284, 0.418688
      %v313 = vsub.f32 %v309, %v311
      %v314 = vsub.f32 %v310, %v312
      %v315 = vmul.f32 %v295, 0.081312
      %v316 = vmul.f32 %v296, 0.081312
      %v317 = vsub.f32 %v313, %v315
      %v318 = vsub.f32 %v314, %v316
      %v319 = vadd.f32 %v317, 128.0
      %v320 = vadd.f32 %v318, 128.0
      %v321 = vld [vmem:[%s1] sm:$0xff]
      %v322 = vld [vmem:[%s1 + $0x8] sm:$0xff]
      %v323 = vld [vmem:[%s1 + $0x10] sm:$0xff]
      %v324 = vld [vmem:[%s1 + $0x18] sm:$0xff]
      %vm325 = vcmask 261120
      %v327 = vsel %vm325, %v307, 0
      %v330 = vsel %vm325, %v308, 0
      %332 = vmatpush.msra.mxu0 0.0
      %333 = vmatpush.msra.mxu0 0.0
      %334 = vmatpush.msra.mxu0 0.0
      %335 = vmatpush.msra.mxu0 0.0
      %336 = vmatpush.msra.mxu0 0.0
      %337 = vmatpush.msra.mxu0 0.0
      %338 = vmatpush.msra.mxu0 0.0
      %339 = vmatpush.msra.mxu0 0.0
      %340 = vmatpush.msra.mxu0 0.0
      %341 = vmatpush.msra.mxu0 0.0
      %342 = vmatpush.msra.mxu0 0.0
      %343 = vmatpush.msra.mxu0 0.0
      %344 = vmatpush.msra.mxu0 %v324
      %345 = vmatpush.msra.mxu0 %v323
      %346 = vmatpush.msra.mxu0 %v322
      %347 = vmatpush.msra.mxu0 %v321
      %348 = vmatmul.f32.gmra.mxu0 %v327
      %v349 = vpop.f32.mrf.mxu0
      %v350 = vadd.f32 0.0, %v349
      %351 = vmatmul.f32.gmra.mxu0 %v330
      %v352 = vpop.f32.mrf.mxu0
      %v353 = vadd.f32 0.0, %v352
      %354 = vdwg.mxu0
      %vm355 = vcmask 130048
      %356 = vst.msk [vmem:[%s232] sm:$0xff] %vm355, %v350
      %357 = vst.msk [vmem:[%s232 + $0x8] sm:$0xff] %vm355, %v353
      %v358 = vld [vmem:[%s1] sm:$0xff]
      %v359 = vld [vmem:[%s1 + $0x8] sm:$0xff]
      %v360 = vld [vmem:[%s1 + $0x10] sm:$0xff]
      %v361 = vld [vmem:[%s1 + $0x18] sm:$0xff]
      %v363 = vsel %vm325, %v319, 0
      %v366 = vsel %vm325, %v320, 0
      %368 = vmatpush.msra.mxu0 0.0
      %369 = vmatpush.msra.mxu0 0.0
      %370 = vmatpush.msra.mxu0 0.0
      %371 = vmatpush.msra.mxu0 0.0
      %372 = vmatpush.msra.mxu0 0.0
      %373 = vmatpush.msra.mxu0 0.0
      %374 = vmatpush.msra.mxu0 0.0
      %375 = vmatpush.msra.mxu0 0.0
      %376 = vmatpush.msra.mxu0 0.0
      %377 = vmatpush.msra.mxu0 0.0
      %378 = vmatpush.msra.mxu0 0.0
      %379 = vmatpush.msra.mxu0 0.0
      %380 = vmatpush.msra.mxu0 %v361
      %381 = vmatpush.msra.mxu0 %v360
      %382 = vmatpush.msra.mxu0 %v359
      %383 = vmatpush.msra.mxu0 %v358
      %384 = vmatmul.f32.gmra.mxu0 %v363
      %v385 = vpop.f32.mrf.mxu0
      %v386 = vadd.f32 0.0, %v385
      %387 = vmatmul.f32.gmra.mxu0 %v366
      %v388 = vpop.f32.mrf.mxu0
      %v389 = vadd.f32 0.0, %v388
      %390 = vdwg.mxu0
      %s391 = scalar_lea.vmem %s232, 16
      %392 = vst.msk [vmem:[%s391] sm:$0xff] %vm355, %v386
      %393 = vst.msk [vmem:[%s391 + $0x8] sm:$0xff] %vm355, %v389
      %s394 = smul.u32 2, %s20
      %p395 = scmp.lt.s32.totalorder %s19, 1
      %s396 = scalar_select %p395, %s19, 1
      %p397 = scmp.lt.s32.totalorder %s394, 1
      %s398 = scalar_select %p397, %s394, 1
      %s399 = smul.addr %s396, 2
      %s400 = sadd.s32 %s398, %s399
      %s401 = smul.addr %s400, 8
      %s402 = scalar_lea.vmem %s2, %s401
      %s403 = smul.u32 2, %s20
      %p404 = scmp.lt.s32.totalorder %s19, 1
      %s405 = scalar_select %p404, %s19, 1
      %p406 = scmp.lt.s32.totalorder %s403, 1
      %s407 = scalar_select %p406, %s403, 1
      %s408 = smul.addr %s405, 4
      %s409 = sadd.s32 %s407, %s408
      %s410 = smul.addr %s409, 8
      %s411 = scalar_lea.vmem %s3, %s410
      // Predicated region
      $region29: #{_lambda_.4} parent=27 // pred_check
        %p412 = pneg %p96
      $region30: #{_lambda_.4} parent=27 // pred_check_branch
        %414 = sbr.rel (%p412) target = $region32
      $region31: #{_lambda_.4} parent=27 // pred_region
        %s415 = smul.u32 2, %s20
      $region32: #{_lambda_.4} parent=27 // pred_fallthru
        _
      // Predicated region
      $region33: #{_lambda_.4} parent=27 // pred_check
        %p416 = pneg %p124
      $region34: #{_lambda_.4} parent=27 // pred_check_branch
        %418 = sbr.rel (%p416) target = $region36
      $region35: #{_lambda_.4} parent=27 // pred_region
        %s419 = smul.u32 2, %s20
      $region36: #{_lambda_.4} parent=27 // pred_fallthru
        _
    $region28: #{_lambda_.4} parent=5 // pred_fallthru
      _
    %p420 = scmp.le.s32.totalorder 2, %s10
    // Predicated region
    $region37: #{_lambda_.4} parent=5 // pred_check
      %p421 = pneg %p420
    $region38: #{_lambda_.4} parent=5 // pred_check_branch
      %423 = sbr.rel (%p421) target = $region40
    $region39: #{_lambda_.4} parent=5 // pred_region
      %s424 = ssub.s32 %s10, 2
      // Predicated region
      $region41: #{_lambda_.4} parent=39 // pred_check
        %p425 = pneg %p102
      $region42: #{_lambda_.4} parent=39 // pred_check_branch
        %427 = sbr.rel (%p425) target = $region44
      $region43: #{_lambda_.4} parent=39 // pred_region
        %s428 = smul.u32 2, %s22
        %p429 = scmp.lt.s32.totalorder %s21, 1
        %s430 = scalar_select %p429, %s21, 1
        %p431 = scmp.lt.s32.totalorder %s428, 1
        %s432 = scalar_select %p431, %s428, 1
        %s433 = smul.addr %s430, 2
        %s434 = sadd.s32 %s432, %s433
        %s435 = smul.addr %s434, 8
        %s436 = scalar_lea.vmem %s2, %s435
      $region44: #{_lambda_.4} parent=39 // pred_fallthru
        _
      // Predicated region
      $region45: #{_lambda_.4} parent=39 // pred_check
        %p437 = pneg %p130
      $region46: #{_lambda_.4} parent=39 // pred_check_branch
        %439 = sbr.rel (%p437) target = $region48
      $region47: #{_lambda_.4} parent=39 // pred_region
        %s440 = smul.u32 2, %s22
        %p441 = scmp.lt.s32.totalorder %s21, 1
        %s442 = scalar_select %p441, %s21, 1
        %p443 = scmp.lt.s32.totalorder %s440, 1
        %s444 = scalar_select %p443, %s440, 1
        %s445 = smul.addr %s442, 4
        %s446 = sadd.s32 %s444, %s445
        %s447 = smul.addr %s446, 8
        %s448 = scalar_lea.vmem %s3, %s447
      $region48: #{_lambda_.4} parent=39 // pred_fallthru
        _
    $region40: #{_lambda_.4} parent=5 // pred_fallthru
      _
  $region6: #{_lambda_.4} parent=0 // loop_footer
    %s14 = sadd.s32 1, %s10
  $region7: #{_lambda_.4} parent=0 // loop_footer_branch
    %9 = sbr.rel target = $region3
  $region8: #{_lambda_.4} parent=0 // loop_exit
    _

// kernel: _lambda_.5
$region0: #{_lambda_.5}
  #allocation0 [shape = 'u32[]', space=smem, size = 0x4, offset = 0x4, fixed_abs, tag = 'smem constant byte address 0x4 - core index']
  #allocation1 [shape = 'u32[72,128]{1,0:T(1,128)}', space=vmem, size = 0x9000, scoped, tag = 'internal scratch']
  %s0 = inlined_call_operand.vmem [shape: f32[16,128], index: 0, kind: input, shape index: {}]
  %s1 = inlined_call_operand.vmem [shape: f32[128,128], index: 1, kind: input, shape index: {}]
  %s2 = inlined_call_operand.vmem [shape: f32[128,128], index: 2, kind: input, shape index: {}]
  %s3 = inlined_call_operand.vmem [shape: f32[16,128], index: 3, kind: output, shape index: {}]
  %s4 = sld [smem:[#allocation0]]
  $region22: #{_lambda_.5} parent=0
    _
  %s6 = ssub.s32 1, %s4
  %s7 = scalar_select 0, %s6, %s4
  // Predicated region
  $region2: #{_lambda_.5} parent=0 // pred_check
    _
  $region3: #{_lambda_.5} parent=0 // pred_check_branch
    %9 = sbr.rel (0) target = $region5
  $region4: #{_lambda_.5} parent=0 // pred_region
    _
  $region5: #{_lambda_.5} parent=0 // pred_fallthru
    _
  // Predicated region
  $region6: #{_lambda_.5} parent=0 // pred_check
    _
  $region7: #{_lambda_.5} parent=0 // pred_check_branch
    %11 = sbr.rel (0) target = $region9
  $region8: #{_lambda_.5} parent=0 // pred_region
    _
  $region9: #{_lambda_.5} parent=0 // pred_fallthru
    _
  // Predicated region
  $region10: #{_lambda_.5} parent=0 // pred_check
    _
  $region11: #{_lambda_.5} parent=0 // pred_check_branch
    %13 = sbr.rel (0) target = $region13
  $region12: #{_lambda_.5} parent=0 // pred_region
    _
  $region13: #{_lambda_.5} parent=0 // pred_fallthru
    _
  %v14 = vld [vmem:[%s0] sm:$0xff]
  %v15 = vld [vmem:[%s0 + $0x8] sm:$0xff]
  %v16 = vsub.f32 %v14, 128.0
  %v17 = vsub.f32 %v15, 128.0
  %v18 = vld [vmem:[%s1] sm:$0xff]
  %v19 = vld [vmem:[%s1 + $0x8] sm:$0xff]
  %v20 = vld [vmem:[%s1 + $0x10] sm:$0xff]
  %v21 = vld [vmem:[%s1 + $0x18] sm:$0xff]
  %v22 = vld [vmem:[%s1 + $0x20] sm:$0xff]
  %v23 = vld [vmem:[%s1 + $0x28] sm:$0xff]
  %v24 = vld [vmem:[%s1 + $0x30] sm:$0xff]
  %v25 = vld [vmem:[%s1 + $0x38] sm:$0xff]
  %v26 = vld [vmem:[%s1 + $0x40] sm:$0xff]
  %v27 = vld [vmem:[%s1 + $0x48] sm:$0xff]
  %v28 = vld [vmem:[%s1 + $0x50] sm:$0xff]
  %v29 = vld [vmem:[%s1 + $0x58] sm:$0xff]
  %v30 = vld [vmem:[%s1 + $0x60] sm:$0xff]
  %v31 = vld [vmem:[%s1 + $0x68] sm:$0xff]
  %v32 = vld [vmem:[%s1 + $0x70] sm:$0xff]
  %v33 = vld [vmem:[%s1 + $0x78] sm:$0xff]
  %34 = vmatpush.msra.mxu0 %v33
  %35 = vmatpush.msra.mxu0 %v32
  %36 = vmatpush.msra.mxu0 %v31
  %37 = vmatpush.msra.mxu0 %v30
  %38 = vmatpush.msra.mxu0 %v29
  %39 = vmatpush.msra.mxu0 %v28
  %40 = vmatpush.msra.mxu0 %v27
  %41 = vmatpush.msra.mxu0 %v26
  %42 = vmatpush.msra.mxu0 %v25
  %43 = vmatpush.msra.mxu0 %v24
  %44 = vmatpush.msra.mxu0 %v23
  %45 = vmatpush.msra.mxu0 %v22
  %46 = vmatpush.msra.mxu0 %v21
  %47 = vmatpush.msra.mxu0 %v20
  %48 = vmatpush.msra.mxu0 %v19
  %49 = vmatpush.msra.mxu0 %v18
  %50 = vmatmul.f32.gmra.mxu0 %v16
  %v51 = vpop.f32.mrf.mxu0
  %v52 = vadd.f32 0.0, %v51
  %53 = vmatmul.f32.gmra.mxu0 %v17
  %v54 = vpop.f32.mrf.mxu0
  %v55 = vadd.f32 0.0, %v54
  %56 = vdwg.mxu0
  %v57 = vround.ne.pseudo %v52
  %v58 = vround.ne.pseudo %v55
  %v59 = vsub.f32 %v52, %v57
  %v60 = vsub.f32 %v55, %v58
  %v61 = vmul.f32 %v59, %v59
  %v62 = vmul.f32 %v60, %v60
  %v63 = vmul.f32 %v59, %v61
  %v64 = vmul.f32 %v60, %v62
  %v65 = vadd.f32 %v57, %v63
  %v66 = vadd.f32 %v58, %v64
  %v67 = vld [vmem:[%s2] sm:$0xff]
  %v68 = vld [vmem:[%s2 + $0x8] sm:$0xff]
  %v69 = vld [vmem:[%s2 + $0x10] sm:$0xff]
  %v70 = vld [vmem:[%s2 + $0x18] sm:$0xff]
  %v71 = vld [vmem:[%s2 + $0x20] sm:$0xff]
  %v72 = vld [vmem:[%s2 + $0x28] sm:$0xff]
  %v73 = vld [vmem:[%s2 + $0x30] sm:$0xff]
  %v74 = vld [vmem:[%s2 + $0x38] sm:$0xff]
  %v75 = vld [vmem:[%s2 + $0x40] sm:$0xff]
  %v76 = vld [vmem:[%s2 + $0x48] sm:$0xff]
  %v77 = vld [vmem:[%s2 + $0x50] sm:$0xff]
  %v78 = vld [vmem:[%s2 + $0x58] sm:$0xff]
  %v79 = vld [vmem:[%s2 + $0x60] sm:$0xff]
  %v80 = vld [vmem:[%s2 + $0x68] sm:$0xff]
  %v81 = vld [vmem:[%s2 + $0x70] sm:$0xff]
  %v82 = vld [vmem:[%s2 + $0x78] sm:$0xff]
  %83 = vmatpush.msra.mxu0 %v82
  %84 = vmatpush.msra.mxu0 %v81
  %85 = vmatpush.msra.mxu0 %v80
  %86 = vmatpush.msra.mxu0 %v79
  %87 = vmatpush.msra.mxu0 %v78
  %88 = vmatpush.msra.mxu0 %v77
  %89 = vmatpush.msra.mxu0 %v76
  %90 = vmatpush.msra.mxu0 %v75
  %91 = vmatpush.msra.mxu0 %v74
  %92 = vmatpush.msra.mxu0 %v73
  %93 = vmatpush.msra.mxu0 %v72
  %94 = vmatpush.msra.mxu0 %v71
  %95 = vmatpush.msra.mxu0 %v70
  %96 = vmatpush.msra.mxu0 %v69
  %97 = vmatpush.msra.mxu0 %v68
  %98 = vmatpush.msra.mxu0 %v67
  %99 = vmatmul.f32.gmra.mxu0 %v65
  %v100 = vpop.f32.mrf.mxu0
  %v101 = vadd.f32 128.0, %v100
  %102 = vmatmul.f32.gmra.mxu0 %v66
  %v103 = vpop.f32.mrf.mxu0
  %v104 = vadd.f32 128.0, %v103
  %105 = vdwg.mxu0
  %106 = vst [vmem:[%s3] sm:$0xff] %v101
  %107 = vst [vmem:[%s3 + $0x8] sm:$0xff] %v104
  // Predicated region
  $region14: #{_lambda_.5} parent=0 // pred_check
    _
  $region15: #{_lambda_.5} parent=0 // pred_check_branch
    %109 = sbr.rel (0) target = $region17
  $region16: #{_lambda_.5} parent=0 // pred_region
    _
  $region17: #{_lambda_.5} parent=0 // pred_fallthru
    _
  // Predicated region
  $region18: #{_lambda_.5} parent=0 // pred_check
    _
  $region19: #{_lambda_.5} parent=0 // pred_check_branch
    %111 = sbr.rel (0) target = $region21
  $region20: #{_lambda_.5} parent=0 // pred_region
    _
  $region21: #{_lambda_.5} parent=0 // pred_fallthru
    _

// kernel: _lambda_.7
$region0: #{_lambda_.7}
  #allocation0 [shape = 'u32[]', space=smem, size = 0x4, offset = 0x4, fixed_abs, tag = 'smem constant byte address 0x4 - core index']
  #allocation1 [shape = 'u32[72,128]{1,0:T(1,128)}', space=vmem, size = 0x9000, scoped, tag = 'internal scratch']
  %s0 = inlined_call_operand.vmem [shape: f32[2,16,64], index: 0, kind: input, shape index: {}]
  %s1 = inlined_call_operand.vmem [shape: f32[2,2,16,16], index: 1, kind: input, shape index: {}]
  %s2 = inlined_call_operand.vmem [shape: f32[16,32], index: 2, kind: input, shape index: {}]
  %s3 = inlined_call_operand.vmem [shape: f32[2,3,16,64], index: 3, kind: output, shape index: {}]
  %s4 = sld [smem:[#allocation0]]
  $region45: #{_lambda_.7} parent=0
    _
  %s6 = ssub.s32 1, %s4
  %s7 = scalar_select 0, %s6, %s4
  loop: start=0, step=1, limit=4
  $region2: #{_lambda_.7} parent=0 // loop_pre_header
    _
  $region3: #{_lambda_.7} parent=0 // loop_header
    %s9 = sphi 0, %s13
    %p10 = scmp.ge.s32.totalorder %s9, 4
    %s16 = sphi 0, %s28
    %s17 = sphi 0, %s24
    %s18 = sphi 0, %s16
    %s19 = sphi 0, %s17
    %s20 = sphi 0, %s18
    %s21 = sphi 0, %s19
    %s33 = sphi 0, %s35
    %s36 = sphi 0, %s33
    %s37 = sphi 0, %s36
    %s53 = sphi 0, %s37
    %s61 = sphi 0, %s63
    %s64 = sphi 0, %s61
    %s65 = sphi 0, %s64
    %s81 = sphi 0, %s65
    %s85 = sphi 0, %s85
    %s87 = sphi 0, %s85
    %s88 = sphi 0, %s87
    %s102 = sphi 0, %s88
    %s110 = sphi 0, %s112
    %s113 = sphi 0, %s110
    %s114 = sphi 0, %s113
    %s130 = sphi 0, %s114
  $region4: #{_lambda_.7} parent=0 // loop_header_branch
    %12 = sbr.rel (%p10) target = $region8
  $region5: #{_lambda_.7} parent=0 // loop_body
    %s14 = ssub.s32 %s9, 1
    %s15 = ssub.s32 %s9, 2
    %s22 = sadd.s32 1, %s17
    %p23 = scmp.ge.s32.totalorder %s22, 1
    %s24 = scalar_select %p23, 0, %s22
    %s25 = sadd.s32 1, %s16
    %s26 = scalar_select %p23, %s25, %s16
    %p27 = scmp.ge.s32.totalorder %s26, 2
    %s28 = scalar_select %p27, 0, %s26
    %s29 = ssub.s32 %s16, %s28
    %s30 = ssub.s32 %s17, %s24
    %s31 = sor.u32 %s29, %s30
    %p32 = scmp.eq.s32.totalorder %s31, 0
    %s34 = sadd.s32 %s33, 1
    %s35 = scalar_select %p32, %s33, %s34
    %p38 = pneg %p32
    %p39 = scmp.eq.s32.totalorder %s9, 1
    %p40 = por %p38, %p39
    %p41 = scmp.ne.s32.totalorder %s33, %s36
    %p42 = scmp.eq.s32.totalorder %s9, 0
    %p43 = por %p41, %p42
    %p44 = scmp.ne.s32.totalorder %s33, %s36
    %p45 = scmp.eq.s32.totalorder %s14, 1
    %p46 = por %p44, %p45
    %p47 = scmp.ne.s32.totalorder %s36, %s37
    %p48 = scmp.eq.s32.totalorder %s14, 0
    %p49 = por %p47, %p48
    %p50 = scmp.ne.s32.totalorder %s36, %s37
    %p51 = scmp.eq.s32.totalorder %s15, 1
    %p52 = por %p50, %p51
    %p54 = scmp.ne.s32.totalorder %s37, %s53
    %p55 = scmp.eq.s32.totalorder %s15, 0
    %p56 = por %p54, %p55
    %s57 = ssub.s32 %s16, %s28
    %s58 = ssub.s32 %s17, %s24
    %s59 = sor.u32 %s57, %s58
    %p60 = scmp.eq.s32.totalorder %s59, 0
    %s62 = sadd.s32 %s61, 1
    %s63 = scalar_select %p60, %s61, %s62
    %p66 = pneg %p60
    %p67 = scmp.eq.s32.totalorder %s9, 1
    %p68 = por %p66, %p67
    %p69 = scmp.ne.s32.totalorder %s61, %s64
    %p70 = scmp.eq.s32.totalorder %s9, 0
    %p71 = por %p69, %p70
    %p72 = scmp.ne.s32.totalorder %s61, %s64
    %p73 = scmp.eq.s32.totalorder %s14, 1
    %p74 = por %p72, %p73
    %p75 = scmp.ne.s32.totalorder %s64, %s65
    %p76 = scmp.eq.s32.totalorder %s14, 0
    %p77 = por %p75, %p76
    %p78 = scmp.ne.s32.totalorder %s64, %s65
    %p79 = scmp.eq.s32.totalorder %s15, 1
    %p80 = por %p78, %p79
    %p82 = scmp.ne.s32.totalorder %s65, %s81
    %p83 = scmp.eq.s32.totalorder %s15, 0
    %p84 = por %p82, %p83
    %s86 = sadd.s32 %s85, 1
    %p89 = scmp.eq.s32.totalorder %s9, 1
    %p90 = scmp.ne.s32.totalorder %s85, %s87
    %p91 = scmp.eq.s32.totalorder %s9, 0
    %p92 = por %p90, %p91
    %p93 = scmp.ne.s32.totalorder %s85, %s87
    %p94 = scmp.eq.s32.totalorder %s14, 1
    %p95 = por %p93, %p94
    %p96 = scmp.ne.s32.totalorder %s87, %s88
    %p97 = scmp.eq.s32.totalorder %s14, 0
    %p98 = por %p96, %p97
    %p99 = scmp.ne.s32.totalorder %s87, %s88
    %p100 = scmp.eq.s32.totalorder %s15, 1
    %p101 = por %p99, %p100
    %p103 = scmp.ne.s32.totalorder %s88, %s102
    %p104 = scmp.eq.s32.totalorder %s15, 0
    %p105 = por %p103, %p104
    %s106 = ssub.s32 %s16, %s28
    %s107 = ssub.s32 %s17, %s24
    %s108 = sor.u32 %s106, %s107
    %p109 = scmp.eq.s32.totalorder %s108, 0
    %s111 = sadd.s32 %s110, 1
    %s112 = scalar_select %p109, %s110, %s111
    %p115 = pneg %p109
    %p116 = scmp.eq.s32.totalorder %s9, 1
    %p117 = por %p115, %p116
    %p118 = scmp.ne.s32.totalorder %s110, %s113
    %p119 = scmp.eq.s32.totalorder %s9, 0
    %p120 = por %p118, %p119
    %p121 = scmp.ne.s32.totalorder %s110, %s113
    %p122 = scmp.eq.s32.totalorder %s14, 1
    %p123 = por %p121, %p122
    %p124 = scmp.ne.s32.totalorder %s113, %s114
    %p125 = scmp.eq.s32.totalorder %s14, 0
    %p126 = por %p124, %p125
    %p127 = scmp.ne.s32.totalorder %s113, %s114
    %p128 = scmp.eq.s32.totalorder %s15, 1
    %p129 = por %p127, %p128
    %p131 = scmp.ne.s32.totalorder %s114, %s130
    %p132 = scmp.eq.s32.totalorder %s15, 0
    %p133 = por %p131, %p132
    %p134 = scmp.le.s32.totalorder 1, %s9
    %p135 = scmp.lt.s32.totalorder %s9, 3
    %p136 = pnand %p134, %p135
    %p137 = pneg %p136
    // Predicated region
    $region9: #{_lambda_.7} parent=5 // pred_check
      _
    $region10: #{_lambda_.7} parent=5 // pred_check_branch
      %139 = sbr.rel (%p136) target = $region12
    $region11: #{_lambda_.7} parent=5 // pred_region
      %s140 = ssub.s32 %s9, 1
      // Predicated region
      $region13: #{_lambda_.7} parent=11 // pred_check
        %p141 = pneg %p98
      $region14: #{_lambda_.7} parent=11 // pred_check_branch
        %143 = sbr.rel (%p141) target = $region16
      $region15: #{_lambda_.7} parent=11 // pred_region
        _
      $region16: #{_lambda_.7} parent=11 // pred_fallthru
        _
    $region12: #{_lambda_.7} parent=5 // pred_fallthru
      _
    %p144 = scmp.lt.s32.totalorder %s9, 2
    // Predicated region
    $region17: #{_lambda_.7} parent=5 // pred_check
      %p145 = pneg %p144
    $region18: #{_lambda_.7} parent=5 // pred_check_branch
      %147 = sbr.rel (%p145) target = $region20
    $region19: #{_lambda_.7} parent=5 // pred_region
      // Predicated region
      $region21: #{_lambda_.7} parent=19 // pred_check
        %p148 = pneg %p43
      $region22: #{_lambda_.7} parent=19 // pred_check_branch
        %150 = sbr.rel (%p148) target = $region24
      $region23: #{_lambda_.7} parent=19 // pred_region
        %s151 = smul.u32 2, %s17
        %p152 = scmp.lt.s32.totalorder %s16, 1
        %s153 = scalar_select %p152, %s16, 1
        %p154 = scmp.lt.s32.totalorder %s151, 1
        %s155 = scalar_select %p154, %s151, 1
        %s156 = smul.addr %s153, 2
        %s157 = sadd.s32 %s155, %s156
        %s158 = smul.addr %s157, 8
        %s159 = scalar_lea.vmem %s0, %s158
        %s160 = smul.u32 2, %s17
      $region24: #{_lambda_.7} parent=19 // pred_fallthru
        _
      // Predicated region
      $region25: #{_lambda_.7} parent=19 // pred_check
        %p161 = pneg %p71
      $region26: #{_lambda_.7} parent=19 // pred_check_branch
        %163 = sbr.rel (%p161) target = $region28
      $region27: #{_lambda_.7} parent=19 // pred_region
        %s164 = smul.u32 2, %s17
        %p165 = scmp.lt.s32.totalorder %s16, 1
        %s166 = scalar_select %p165, %s16, 1
        %p167 = scmp.lt.s32.totalorder %s164, 1
        %s168 = scalar_select %p167, %s164, 1
        %s169 = smul.addr %s166, 4
        %s170 = sadd.s32 %s168, %s169
        %s171 = smul.addr %s170, 8
        %s172 = scalar_lea.vmem %s1, %s171
        %s173 = smul.u32 2, %s17
      $region28: #{_lambda_.7} parent=19 // pred_fallthru
        _
    $region20: #{_lambda_.7} parent=5 // pred_fallthru
      _
    %p174 = scmp.le.s32.totalorder 1, %s9
    %p175 = scmp.lt.s32.totalorder %s9, 3
    %p176 = pnand %p174, %p175
    %p177 = pneg %p176
    // Predicated region
    $region29: #{_lambda_.7} parent=5 // pred_check
      _
    $region30: #{_lambda_.7} parent=5 // pred_check_branch
      %179 = sbr.rel (%p176) target = $region32
    $region31: #{_lambda_.7} parent=5 // pred_region
      %s180 = ssub.s32 %s9, 1
      %s181 = smul.u32 2, %s19
      %p182 = scmp.lt.s32.totalorder %s18, 1
      %s183 = scalar_select %p182, %s18, 1
      %p184 = scmp.lt.s32.totalorder %s181, 1
      %s185 = scalar_select %p184, %s181, 1
      %s186 = smul.addr %s183, 2
      %s187 = sadd.s32 %s185, %s186
      %s188 = smul.addr %s187, 8
      %s189 = scalar_lea.vmem %s0, %s188
      %p190 = pneg %p49
      %p191 = pneg %p46
      %s192 = smul.u32 2, %s19
      %p193 = scmp.lt.s32.totalorder %s18, 1
      %s194 = scalar_select %p193, %s18, 1
      %p195 = scmp.lt.s32.totalorder %s192, 1
      %s196 = scalar_select %p195, %s192, 1
      %s197 = smul.addr %s194, 4
      %s198 = sadd.s32 %s196, %s197
      %s199 = smul.addr %s198, 8
      %s200 = scalar_lea.vmem %s1, %s199
      %p201 = pneg %p77
      %p202 = pneg %p74
      %p203 = pneg %p98
      %p204 = pneg %p95
      %p205 = pneg %p126
      %p206 = pneg %p123
      %s207 = smul.u32 2, %s19
      %p208 = scmp.lt.s32.totalorder %s18, 1
      %s209 = scalar_select %p208, %s18, 1
      %p210 = scmp.lt.s32.totalorder %s207, 1
      %s211 = scalar_select %p210, %s207, 1
      %s212 = smul.addr %s209, 6
      %s213 = sadd.s32 %s211, %s212
      %s214 = smul.addr %s213, 8
      %s215 = scalar_lea.vmem %s3, %s214
      %s216 = smul.u32 2, %s19
      %p217 = scmp.lt.s32.totalorder %s18, 1
      %s218 = scalar_select %p217, %s18, 1
      %p219 = scmp.lt.s32.totalorder %s216, 1
      %s220 = scalar_select %p219, %s216, 1
      %s221 = smul.addr %s218, 2
      %s222 = sadd.s32 %s220, %s221
      %s223 = smul.addr %s222, 8
      %s224 = scalar_lea.vmem %s0, %s223
      %s225 = smul.u32 2, %s19
      %s226 = smul.u32 2, %s19
      %p227 = scmp.lt.s32.totalorder %s18, 1
      %s228 = scalar_select %p227, %s18, 1
      %p229 = scmp.lt.s32.totalorder %s226, 1
      %s230 = scalar_select %p229, %s226, 1
      %s231 = smul.addr %s228, 4
      %s232 = sadd.s32 %s230, %s231
      %s233 = smul.addr %s232, 8
      %s234 = scalar_lea.vmem %s1, %s233
      %s235 = smul.u32 2, %s19
      %s236 = smul.u32 2, %s19
      %p237 = scmp.lt.s32.totalorder %s18, 1
      %s238 = scalar_select %p237, %s18, 1
      %p239 = scmp.lt.s32.totalorder %s236, 1
      %s240 = scalar_select %p239, %s236, 1
      %s241 = smul.addr %s238, 6
      %s242 = sadd.s32 %s240, %s241
      %s243 = smul.addr %s242, 8
      %s244 = scalar_lea.vmem %s3, %s243
      %s245 = smul.u32 2, %s19
      %v246 = vld [vmem:[%s234] sm:$0xff]
      %v247 = vld [vmem:[%s234 + $0x8] sm:$0xff]
      %v248 = vsub.f32 %v246, 128.0
      %v249 = vsub.f32 %v247, 128.0
      %v250 = vld [vmem:[%s2] sm:$0xff]
      %v251 = vld [vmem:[%s2 + $0x8] sm:$0xff]
      %vm252 = vcmask 130048
      %v254 = vsel %vm252, %v248, 0
      %v257 = vsel %vm252, %v249, 0
      %259 = vmatpush.msra.mxu0 0.0
      %260 = vmatpush.msra.mxu0 0.0
      %261 = vmatpush.msra.mxu0 0.0
      %262 = vmatpush.msra.mxu0 0.0
      %263 = vmatpush.msra.mxu0 0.0
      %264 = vmatpush.msra.mxu0 0.0
      %265 = vmatpush.msra.mxu0 0.0
      %266 = vmatpush.msra.mxu0 0.0
      %267 = vmatpush.msra.mxu0 0.0
      %268 = vmatpush.msra.mxu0 0.0
      %269 = vmatpush.msra.mxu0 0.0
      %270 = vmatpush.msra.mxu0 0.0
      %271 = vmatpush.msra.mxu0 0.0
      %272 = vmatpush.msra.mxu0 0.0
      %273 = vmatpush.msra.mxu0 %v251
      %274 = vmatpush.msra.mxu0 %v250
      %275 = vmatmul.f32.gmra.mxu0 %v254
      %v276 = vpop.f32.mrf.mxu0
      %v277 = vadd.f32 0.0, %v276
      %278 = vmatmul.f32.gmra.mxu0 %v257
      %v279 = vpop.f32.mrf.mxu0
      %v280 = vadd.f32 0.0, %v279
      %281 = vdwg.mxu0
      %s282 = scalar_lea.vmem %s234, 16
      %v283 = vld [vmem:[%s282] sm:$0xff]
      %v284 = vld [vmem:[%s282 + $0x8] sm:$0xff]
      %v285 = vsub.f32 %v283, 128.0
      %v286 = vsub.f32 %v284, 128.0
      %v288 = vsel %vm252, %v285, 0
      %v291 = vsel %vm252, %v286, 0
      %293 = vmatpush.msra.mxu0 0.0
      %294 = vmatpush.msra.mxu0 0.0
      %295 = vmatpush.msra.mxu0 0.0
      %296 = vmatpush.msra.mxu0 0.0
      %297 = vmatpush.msra.mxu0 0.0
      %298 = vmatpush.msra.mxu0 0.0
      %299 = vmatpush.msra.mxu0 0.0
      %300 = vmatpush.msra.mxu0 0.0
      %301 = vmatpush.msra.mxu0 0.0
      %302 = vmatpush.msra.mxu0 0.0
      %303 = vmatpush.msra.mxu0 0.0
      %304 = vmatpush.msra.mxu0 0.0
      %305 = vmatpush.msra.mxu0 0.0
      %306 = vmatpush.msra.mxu0 0.0
      %307 = vmatpush.msra.mxu0 %v251
      %308 = vmatpush.msra.mxu0 %v250
      %309 = vmatmul.f32.gmra.mxu0 %v288
      %v310 = vpop.f32.mrf.mxu0
      %v311 = vadd.f32 0.0, %v310
      %312 = vmatmul.f32.gmra.mxu0 %v291
      %v313 = vpop.f32.mrf.mxu0
      %v314 = vadd.f32 0.0, %v313
      %315 = vdwg.mxu0
      %v316 = vld [vmem:[%s224] sm:$0xff]
      %v317 = vld [vmem:[%s224 + $0x8] sm:$0xff]
      %v318 = vmul.f32 %v311, 1.402
      %v319 = vmul.f32 %v314, 1.402
      %v320 = vadd.f32 %v316, %v318
      %v321 = vadd.f32 %v317, %v319
      %v322 = vmul.f32 %v277, 0.344136
      %v323 = vmul.f32 %v280, 0.344136
      %v324 = vsub.f32 %v316, %v322
      %v325 = vsub.f32 %v317, %v323
      %v326 = vmul.f32 %v311, 0.714136
      %v327 = vmul.f32 %v314, 0.714136
      %v328 = vsub.f32 %v324, %v326
      %v329 = vsub.f32 %v325, %v327
      %v330 = vmul.f32 %v277, 1.772
      %v331 = vmul.f32 %v280, 1.772
      %v332 = vadd.f32 %v316, %v330
      %v333 = vadd.f32 %v317, %v331
      %336 = vrot.lane.b32.xlu0 %v318, 32
      %v337 = vpop.permute.xlu0 %336
      %338 = vrot.lane.b32.xlu0 %v319, 32
      %v339 = vpop.permute.xlu0 %338
      %v342 = vadd.f32 %v316, %v337
      %v343 = vadd.f32 %v317, %v339
      %346 = vrot.lane.b32.xlu0 %v322, 32
      %v347 = vpop.permute.xlu0 %346
      %348 = vrot.lane.b32.xlu0 %v323, 32
      %v349 = vpop.permute.xlu0 %348
      %v352 = vsub.f32 %v316, %v347
      %v353 = vsub.f32 %v317, %v349
      %356 = vrot.lane.b32.xlu0 %v326, 32
      %v357 = vpop.permute.xlu0 %356
      %358 = vrot.lane.b32.xlu0 %v327, 32
      %v359 = vpop.permute.xlu0 %358
      %v362 = vsub.f32 %v352, %v357
      %v363 = vsub.f32 %v353, %v359
      %366 = vrot.lane.b32.xlu0 %v330, 32
      %v367 = vpop.permute.xlu0 %366
      %368 = vrot.lane.b32.xlu0 %v331, 32
      %v369 = vpop.permute.xlu0 %368
      %v372 = vadd.f32 %v316, %v367
      %v373 = vadd.f32 %v317, %v369
      %vm374 = vcmask 261120
      %v375 = vsel %vm374, %v320, %v342
      %v376 = vsel %vm374, %v321, %v343
      %v377 = vmax.f32 %v375, 0.0
      %v378 = vmax.f32 %v376, 0.0
      %v379 = vmin.f32 %v377, 255.0
      %v380 = vmin.f32 %v378, 255.0
      %v381 = vmul.f32 %v379, 0.003921569
      %v382 = vmul.f32 %v380, 0.003921569
      %vm383 = vcmask 523264
      %384 = vst.msk [vmem:[%s244] sm:$0xff] %vm383, %v381
      %385 = vst.msk [vmem:[%s244 + $0x8] sm:$0xff] %vm383, %v382
      %v386 = vsel %vm374, %v328, %v362
      %v387 = vsel %vm374, %v329, %v363
      %v388 = vmax.f32 %v386, 0.0
      %v389 = vmax.f32 %v387, 0.0
      %v390 = vmin.f32 %v388, 255.0
      %v391 = vmin.f32 %v389, 255.0
      %v392 = vmul.f32 %v390, 0.003921569
      %v393 = vmul.f32 %v391, 0.003921569
      %s394 = scalar_lea.vmem %s244, 16
      %395 = vst.msk [vmem:[%s394] sm:$0xff] %vm383, %v392
      %396 = vst.msk [vmem:[%s394 + $0x8] sm:$0xff] %vm383, %v393
      %v397 = vsel %vm374, %v332, %v372
      %v398 = vsel %vm374, %v333, %v373
      %v399 = vmax.f32 %v397, 0.0
      %v400 = vmax.f32 %v398, 0.0
      %v401 = vmin.f32 %v399, 255.0
      %v402 = vmin.f32 %v400, 255.0
      %v403 = vmul.f32 %v401, 0.003921569
      %v404 = vmul.f32 %v402, 0.003921569
      %s405 = scalar_lea.vmem %s244, 32
      %406 = vst.msk [vmem:[%s405] sm:$0xff] %vm383, %v403
      %407 = vst.msk [vmem:[%s405 + $0x8] sm:$0xff] %vm383, %v404
      %s408 = smul.u32 2, %s19
      %p409 = scmp.lt.s32.totalorder %s18, 1
      %s410 = scalar_select %p409, %s18, 1
      %p411 = scmp.lt.s32.totalorder %s408, 1
      %s412 = scalar_select %p411, %s408, 1
      %s413 = smul.addr %s410, 6
      %s414 = sadd.s32 %s412, %s413
      %s415 = smul.addr %s414, 8
      %s416 = scalar_lea.vmem %s3, %s415
      // Predicated region
      $region33: #{_lambda_.7} parent=31 // pred_check
        %p417 = pneg %p123
      $region34: #{_lambda_.7} parent=31 // pred_check_branch
        %419 = sbr.rel (%p417) target = $region36
      $region35: #{_lambda_.7} parent=31 // pred_region
        %s420 = smul.u32 2, %s19
      $region36: #{_lambda_.7} parent=31 // pred_fallthru
        _
    $region32: #{_lambda_.7} parent=5 // pred_fallthru
      _
    %p421 = scmp.le.s32.totalorder 2, %s9
    // Predicated region
    $region37: #{_lambda_.7} parent=5 // pred_check
      %p422 = pneg %p421
    $region38: #{_lambda_.7} parent=5 // pred_check_branch
      %424 = sbr.rel (%p422) target = $region40
    $region39: #{_lambda_.7} parent=5 // pred_region
      %s425 = ssub.s32 %s9, 2
      // Predicated region
      $region41: #{_lambda_.7} parent=39 // pred_check
        %p426 = pneg %p129
      $region42: #{_lambda_.7} parent=39 // pred_check_branch
        %428 = sbr.rel (%p426) target = $region44
      $region43: #{_lambda_.7} parent=39 // pred_region
        %s429 = smul.u32 2, %s21
        %p430 = scmp.lt.s32.totalorder %s20, 1
        %s431 = scalar_select %p430, %s20, 1
        %p432 = scmp.lt.s32.totalorder %s429, 1
        %s433 = scalar_select %p432, %s429, 1
        %s434 = smul.addr %s431, 6
        %s435 = sadd.s32 %s433, %s434
        %s436 = smul.addr %s435, 8
        %s437 = scalar_lea.vmem %s3, %s436
      $region44: #{_lambda_.7} parent=39 // pred_fallthru
        _
    $region40: #{_lambda_.7} parent=5 // pred_fallthru
      _
  $region6: #{_lambda_.7} parent=0 // loop_footer
    %s13 = sadd.s32 1, %s9
  $region7: #{_lambda_.7} parent=0 // loop_footer_branch
    %8 = sbr.rel target = $region3
  $region8: #{_lambda_.7} parent=0 // loop_exit
    _

</llo_original>
